<compile_context>
chip_gen: v5e
topology: v5e:2x2
jax: 0.10.0
libtpu: 0.0.40
codegen_flags: <defaults>
</compile_context>

<pallas_src>
import functools

import jax
import jax.numpy as jnp
from jax import lax
from jax.experimental import pallas as pl
from jax.experimental.pallas import tpu as pltpu


def _round_up(x, m):
    return ((x + m - 1) // m) * m


def _spatial_attention_kernel(x_ref, w_ref, o_ref, sum_ref, max_ref, pad_ref,
                              *, K, P, Wp, TC, C, use_zero_band):
    """One grid step: partial channel reduction; conv+sigmoid on last C step.

    x_ref  : (TC, H, W) VMEM input block (batch dim squeezed).
    w_ref  : (2*K*K,) f32 SMEM conv taps (OIHW flattened).
    o_ref  : (1, H, W) VMEM output block (resident across the C axis).
    sum_ref: (H, W) f32 VMEM running channel sum.
    max_ref: (H, W) f32 VMEM running channel max.
    pad_ref: (2, H+2P, Wp) f32 VMEM zero-padded pooled maps (lane-aligned).
    """
    _, H, W = x_ref.shape
    cstep = pl.program_id(1)
    nc = pl.num_programs(1)

    # ---- partial channel sum / max over this TC-block (capped unroll). ----
    x0 = x_ref[0].astype(jnp.float32)
    if TC > 1:
        def _reduce(c, carry):
            s, m = carry
            xc = x_ref[c].astype(jnp.float32)
            return s + xc, jnp.maximum(m, xc)
        s, m = lax.fori_loop(1, TC, _reduce, (x0, x0),
                             unroll=min(TC - 1, 8))
    else:
        s, m = x0, x0

    @pl.when(cstep == 0)
    def _():
        sum_ref[...] = s
        max_ref[...] = m

    @pl.when(cstep > 0)
    def _():
        sum_ref[...] = sum_ref[...] + s
        max_ref[...] = jnp.maximum(max_ref[...], m)

    # ---- finalize: pad, KxK "same" conv (2 -> 1 ch), sigmoid, store. ----
    @pl.when(cstep == nc - 1)
    def _finalize():
        avg = sum_ref[...] * (1.0 / C)
        mx = max_ref[...]

        # Refresh only the zero halo / pad bands (scratch may be stale; the
        # data region is fully overwritten below).
        zero_rows = jnp.zeros((P, Wp), jnp.float32)
        for c in range(2):
            pad_ref[c, 0:P, :] = zero_rows               # top halo rows
            pad_ref[c, P + H:, :] = zero_rows            # bottom halo rows
            if Wp > W:
                pad_ref[c, P:P + H, W:] = jnp.zeros((H, Wp - W), jnp.float32)
        pad_ref[0, P:P + H, 0:W] = avg                   # lane-aligned stores
        pad_ref[1, P:P + H, 0:W] = mx

        # Lane-aligned row windows (sublane offsets only).
        # TODO(synk): verify via pl.lower_as_mlir that these sublane-offset
        # window loads do not materialize copies; if they do, derive the kh
        # offsets with pltpu.roll(..., axis=0) on the (idle) XLU instead.
        rows = [pad_ref[c, kh:kh + H, :] for c in range(2) for kh in range(K)]

        lane = None
        if not use_zero_band:
            lane = lax.broadcasted_iota(jnp.int32, (H, Wp), 1)

        #   out = sum_kw lane_roll( sum_{c,kh} rows(c,kh) * w[c,kh,kw], P - kw )
        # kw is the outer loop so each kw-partial is one chained accumulation
        # with a single consumer (no per-tap full-array RMW passes), and each
        # accumulator is seeded by its first product.
        acc = None
        for kw in range(K):
            part = None
            for c in range(2):
                for kh in range(K):
                    tap = w_ref[c * K * K + kh * K + kw]
                    term = rows[c * K + kh] * tap
                    part = term if part is None else part + term
            shift = (P - kw) % Wp
            g = pltpu.roll(part, shift, axis=1) if shift else part
            if (not use_zero_band) and kw != P:
                # Roll wrap-around would pull real data; zero it via lane mask.
                valid = (lane >= (P - kw)) & (lane < (W + P - kw))
                g = jnp.where(valid, g, jnp.float32(0.0))
            acc = g if acc is None else acc + g

        o_ref[0] = jax.nn.sigmoid(acc[:, :W]).astype(o_ref.dtype)


def spatial_attention(x, weight, kernel_size=7, c_block=None):
    """x: (B, C, H, W); weight: (1, 2, K, K) conv filter (OIHW, no bias)."""
    assert kernel_size in (3, 7), "kernel size must be 3 or 7"
    B, C, H, W = x.shape
    K = kernel_size
    P = 3 if K == 7 else 1
    Wp = _round_up(W, 128)                # lane-dense, never an extra 128 tile
    use_zero_band = (Wp - W) >= P
    itemsize = jnp.dtype(x.dtype).itemsize

    # ---- generation-aware VMEM budget (128 MiB v5e/v6e, 64 MiB v7x). ----
    try:
        vmem_cap = int(pltpu.get_tpu_info().vmem_capacity_bytes)
    except Exception:                     # conservative fallback
        vmem_cap = 64 << 20
    vmem_budget = int(0.85 * vmem_cap)

    # Resident / per-step VMEM that is not the input block:
    fixed = (2 * H * W * 4                          # sum / max accumulators
             + 2 * (H + 2 * P) * Wp * 4             # padded pooled maps
             + (2 * K + 4) * H * Wp * 4             # conv temporaries
             + 2 * H * W * itemsize)                # double-buffered output

    # ---- pick the channel block TC (divisor of C, double-buffered fit). ----
    if c_block is None:
        in_budget = max(2 * H * W * itemsize,
                        vmem_budget - fixed - (4 << 20))
        max_tc = max(1, in_budget // (2 * H * W * itemsize))
        TC = 1
        for d in range(1, C + 1):
            if C % d == 0 and d <= max_tc:
                TC = d
    else:
        TC = int(c_block)
        assert C % TC == 0, "c_block must divide C"
    nc = C // TC

    w_flat = weight.reshape(-1).astype(jnp.float32)  # (2*K*K,) scalar taps

    kernel = functools.partial(
        _spatial_attention_kernel,
        K=K, P=P, Wp=Wp, TC=TC, C=C, use_zero_band=use_zero_band)

    needed = 2 * TC * H * W * itemsize + fixed + (4 << 20)
    vmem_limit = int(min(vmem_budget, max(needed, 32 << 20)))

    cost = pl.CostEstimate(
        flops=2 * B * H * W * (C + 2 * K * K),
        transcendentals=B * H * W,
        bytes_accessed=(B * C * H * W + B * H * W) * itemsize
        + w_flat.size * 4,
    )

    # TODO(synk): for B == 1 on v7x (2 TensorCores) also split a spatial axis
    # marked "parallel" so both cores get work.
    return pl.pallas_call(
        kernel,
        out_shape=jax.ShapeDtypeStruct((B, 1, H, W), x.dtype),
        grid_spec=pltpu.PrefetchScalarGridSpec(
            num_scalar_prefetch=0,
            grid=(B, nc),
            in_specs=[
                pl.BlockSpec((None, TC, H, W), lambda b, c: (b, c, 0, 0)),
                pl.BlockSpec(memory_space=pltpu.MemorySpace.SMEM),
            ],
            out_specs=pl.BlockSpec((None, 1, H, W), lambda b, c: (b, 0, 0, 0)),
            scratch_shapes=[
                pltpu.VMEM((H, W), jnp.float32),               # running sum
                pltpu.VMEM((H, W), jnp.float32),               # running max
                pltpu.VMEM((2, H + 2 * P, Wp), jnp.float32),   # padded pooled
            ],
        ),
        compiler_params=pltpu.CompilerParams(
            dimension_semantics=("parallel", "arbitrary"),
            vmem_limit_bytes=vmem_limit,
        ),
        cost_estimate=cost,
    )(x, w_flat)


def _reference(x, weight):
    avg = jnp.mean(x, axis=1, keepdims=True)
    mx = jnp.max(x, axis=1, keepdims=True)
    pooled = jnp.concatenate([avg, mx], axis=1)
    pad = (weight.shape[-1] - 1) // 2
    y = jax.lax.conv_general_dilated(
        pooled, weight, window_strides=(1, 1),
        padding=((pad, pad), (pad, pad)),
        dimension_numbers=("NCHW", "OIHW", "NCHW"))
    return jax.nn.sigmoid(y)


if __name__ == "__main__":
    key = jax.random.PRNGKey(0)

    def _weight(k, K):
        # Deterministic conv weight init (kaiming-uniform-ish, like nn.Conv2d).
        fan_in = 2 * K * K
        bound = 1.0 / (fan_in ** 0.5)
        return jax.random.uniform(k, (1, 2, K, K), dtype=jnp.float32,
                                  minval=-bound, maxval=bound)

    k1, k2, k3, k4 = jax.random.split(key, 4)

    # Case 1: small shapes, single channel step, K=7, zero-band padding path.
    x1 = jax.random.normal(k1, (2, 4, 16, 16), dtype=jnp.float32)
    w1 = _weight(k2, 7)
    out1 = jax.block_until_ready(spatial_attention(x1, w1, kernel_size=7))
    assert out1.shape == (2, 1, 16, 16)
    assert jnp.allclose(out1, _reference(x1, w1), atol=1e-5, rtol=1e-5), \
        "mismatch vs reference (case 1)"

    # Case 2: same input, forced channel tiling (2 C-steps, accumulator path).
    out2 = jax.block_until_ready(
        spatial_attention(x1, w1, kernel_size=7, c_block=2))
    assert jnp.allclose(out2, _reference(x1, w1), atol=1e-5, rtol=1e-5), \
        "mismatch vs reference (case 2)"

    # Case 3: W % 128 == 0 (lane-mask padding path), K=3, multi C-step.
    x3 = jax.random.normal(k3, (1, 6, 8, 128), dtype=jnp.float32)
    w3 = _weight(k4, 3)
    out3 = jax.block_until_ready(
        spatial_attention(x3, w3, kernel_size=3, c_block=3))
    assert out3.shape == (1, 1, 8, 128)
    assert jnp.allclose(out3, _reference(x3, w3), atol=1e-5, rtol=1e-5), \
        "mismatch vs reference (case 3)"

    print("KERNEL_OK")
</pallas_src>

<mosaic_0001>
module attributes {stable_mosaic.version = 11 : i64} {
  func.func @_spatial_attention_kernel(%arg0: i32, %arg1: i32, %arg2: memref<1x4x16x16xf32, #tpu.memory_space<vmem>>, %arg3: memref<98xf32, #tpu.memory_space<smem>>, %arg4: memref<1x1x16x16xf32, #tpu.memory_space<vmem>>, %arg5: memref<16x16xf32, #tpu.memory_space<vmem>>, %arg6: memref<16x16xf32, #tpu.memory_space<vmem>>, %arg7: memref<2x22x128xf32, #tpu.memory_space<vmem>>) attributes {dimension_semantics = [#tpu.dimension_semantics<parallel>, #tpu.dimension_semantics<arbitrary>], iteration_bounds = array<i64: 2, 1>, scalar_prefetch = 0 : i64, scratch_operands = 3 : i64, tpu.core_type = #tpu.core_type<tc>, window_params = [{transform_indices = @transform_0, window_bounds = array<i64: 1, 4, 16, 16>}, {transform_indices = @transform_1, window_bounds = array<i64: 98>}, {transform_indices = @transform_2, window_bounds = array<i64: 1, 1, 16, 16>}]} {
    %c0 = arith.constant 0 : index
    %c0_0 = arith.constant 0 : index
    %c0_1 = arith.constant 0 : index
    %c0_2 = arith.constant 0 : index
    %0 = vector.load %arg2[%c0, %c0_0, %c0_1, %c0_2] : memref<1x4x16x16xf32, #tpu.memory_space<vmem>>, vector<1x1x16x16xf32>
    %1 = vector.shape_cast %0 : vector<1x1x16x16xf32> to vector<16x16xf32>
    %c1_i32 = arith.constant 1 : i32
    %c0_3 = arith.constant 0 : index
    %2 = arith.index_cast %c1_i32 : i32 to index
    %c0_4 = arith.constant 0 : index
    %c0_5 = arith.constant 0 : index
    %3 = vector.load %arg2[%c0_3, %2, %c0_4, %c0_5] : memref<1x4x16x16xf32, #tpu.memory_space<vmem>>, vector<1x1x16x16xf32>
    %4 = vector.shape_cast %3 : vector<1x1x16x16xf32> to vector<16x16xf32>
    %5 = arith.addf %1, %4 : vector<16x16xf32>
    %6 = arith.maximumf %1, %4 : vector<16x16xf32>
    %c2_i32 = arith.constant 2 : i32
    %c0_6 = arith.constant 0 : index
    %7 = arith.index_cast %c2_i32 : i32 to index
    %c0_7 = arith.constant 0 : index
    %c0_8 = arith.constant 0 : index
    %8 = vector.load %arg2[%c0_6, %7, %c0_7, %c0_8] : memref<1x4x16x16xf32, #tpu.memory_space<vmem>>, vector<1x1x16x16xf32>
    %9 = vector.shape_cast %8 : vector<1x1x16x16xf32> to vector<16x16xf32>
    %10 = arith.addf %5, %9 : vector<16x16xf32>
    %11 = arith.maximumf %6, %9 : vector<16x16xf32>
    %c3_i32 = arith.constant 3 : i32
    %c0_9 = arith.constant 0 : index
    %12 = arith.index_cast %c3_i32 : i32 to index
    %c0_10 = arith.constant 0 : index
    %c0_11 = arith.constant 0 : index
    %13 = vector.load %arg2[%c0_9, %12, %c0_10, %c0_11] : memref<1x4x16x16xf32, #tpu.memory_space<vmem>>, vector<1x1x16x16xf32>
    %14 = vector.shape_cast %13 : vector<1x1x16x16xf32> to vector<16x16xf32>
    %15 = arith.addf %10, %14 : vector<16x16xf32>
    %16 = arith.maximumf %11, %14 : vector<16x16xf32>
    %c3_i32_12 = arith.constant 3 : i32
    %c0_i32 = arith.constant 0 : i32
    %17 = arith.cmpi eq, %arg1, %c0_i32 : i32
    %18 = arith.extui %17 : i1 to i32
    %c0_i32_13 = arith.constant 0 : i32
    %19 = arith.cmpi ne, %18, %c0_i32_13 : i32
    scf.if %19 {
      %c0_18 = arith.constant 0 : index
      %c0_19 = arith.constant 0 : index
      %26 = vector.load %arg5[%c0_18, %c0_19] : memref<16x16xf32, #tpu.memory_space<vmem>>, vector<16x16xf32>
      tpu.vector_store %arg5[%c0_18, %c0_19], %15 {strides = array<i32>} : memref<16x16xf32, #tpu.memory_space<vmem>>, vector<16x16xf32>,
      %c0_20 = arith.constant 0 : index
      %c0_21 = arith.constant 0 : index
      %27 = vector.load %arg6[%c0_20, %c0_21] : memref<16x16xf32, #tpu.memory_space<vmem>>, vector<16x16xf32>
      tpu.vector_store %arg6[%c0_20, %c0_21], %16 {strides = array<i32>} : memref<16x16xf32, #tpu.memory_space<vmem>>, vector<16x16xf32>,
    } else {
    }
    %c0_i32_14 = arith.constant 0 : i32
    %20 = arith.cmpi sgt, %arg1, %c0_i32_14 : i32
    %21 = arith.extui %20 : i1 to i32
    %c0_i32_15 = arith.constant 0 : i32
    %22 = arith.cmpi ne, %21, %c0_i32_15 : i32
    scf.if %22 {
      %c0_18 = arith.constant 0 : index
      %c0_19 = arith.constant 0 : index
      %26 = vector.load %arg5[%c0_18, %c0_19] : memref<16x16xf32, #tpu.memory_space<vmem>>, vector<16x16xf32>
      %27 = arith.addf %26, %15 : vector<16x16xf32>
      %c0_20 = arith.constant 0 : index
      %c0_21 = arith.constant 0 : index
      %28 = vector.load %arg5[%c0_20, %c0_21] : memref<16x16xf32, #tpu.memory_space<vmem>>, vector<16x16xf32>
      tpu.vector_store %arg5[%c0_20, %c0_21], %27 {strides = array<i32>} : memref<16x16xf32, #tpu.memory_space<vmem>>, vector<16x16xf32>,
      %c0_22 = arith.constant 0 : index
      %c0_23 = arith.constant 0 : index
      %29 = vector.load %arg6[%c0_22, %c0_23] : memref<16x16xf32, #tpu.memory_space<vmem>>, vector<16x16xf32>
      %30 = arith.maximumf %29, %16 : vector<16x16xf32>
      %c0_24 = arith.constant 0 : index
      %c0_25 = arith.constant 0 : index
      %31 = vector.load %arg6[%c0_24, %c0_25] : memref<16x16xf32, #tpu.memory_space<vmem>>, vector<16x16xf32>
      tpu.vector_store %arg6[%c0_24, %c0_25], %30 {strides = array<i32>} : memref<16x16xf32, #tpu.memory_space<vmem>>, vector<16x16xf32>,
    } else {
    }
    %c0_i32_16 = arith.constant 0 : i32
    %23 = arith.cmpi eq, %arg1, %c0_i32_16 : i32
    %24 = arith.extui %23 : i1 to i32
    %c0_i32_17 = arith.constant 0 : i32
    %25 = arith.cmpi ne, %24, %c0_i32_17 : i32
    scf.if %25 {
      %c0_18 = arith.constant 0 : index
      %c0_19 = arith.constant 0 : index
      %26 = vector.load %arg5[%c0_18, %c0_19] : memref<16x16xf32, #tpu.memory_space<vmem>>, vector<16x16xf32>
      %cst = arith.constant 2.500000e-01 : f32
      %27 = vector.broadcast %cst : f32 to vector<16x16xf32>
      %28 = arith.mulf %26, %27 : vector<16x16xf32>
      %c0_20 = arith.constant 0 : index
      %c0_21 = arith.constant 0 : index
      %29 = vector.load %arg6[%c0_20, %c0_21] : memref<16x16xf32, #tpu.memory_space<vmem>>, vector<16x16xf32>
      %cst_22 = arith.constant 0.000000e+00 : f32
      %30 = vector.broadcast %cst_22 : f32 to vector<3x128xf32>
      %c0_23 = arith.constant 0 : index
      %c0_24 = arith.constant 0 : index
      %c0_25 = arith.constant 0 : index
      %31 = vector.load %arg7[%c0_23, %c0_24, %c0_25] : memref<2x22x128xf32, #tpu.memory_space<vmem>>, vector<1x3x128xf32>
      %32 = vector.shape_cast %31 : vector<1x3x128xf32> to vector<3x128xf32>
      %33 = vector.shape_cast %30 : vector<3x128xf32> to vector<1x3x128xf32>
      tpu.vector_store %arg7[%c0_23, %c0_24, %c0_25], %33 {strides = array<i32>} : memref<2x22x128xf32, #tpu.memory_space<vmem>>, vector<1x3x128xf32>,
      %c0_26 = arith.constant 0 : index
      %c19 = arith.constant 19 : index
      %c0_27 = arith.constant 0 : index
      %34 = vector.load %arg7[%c0_26, %c19, %c0_27] : memref<2x22x128xf32, #tpu.memory_space<vmem>>, vector<1x3x128xf32>
      %35 = vector.shape_cast %34 : vector<1x3x128xf32> to vector<3x128xf32>
      %36 = vector.shape_cast %30 : vector<3x128xf32> to vector<1x3x128xf32>
      tpu.vector_store %arg7[%c0_26, %c19, %c0_27], %36 {strides = array<i32>} : memref<2x22x128xf32, #tpu.memory_space<vmem>>, vector<1x3x128xf32>,
      %cst_28 = arith.constant 0.000000e+00 : f32
      %37 = vector.broadcast %cst_28 : f32 to vector<16x112xf32>
      %c0_29 = arith.constant 0 : index
      %c3 = arith.constant 3 : index
      %c16 = arith.constant 16 : index
      %38 = vector.load %arg7[%c0_29, %c3, %c16] : memref<2x22x128xf32, #tpu.memory_space<vmem>>, vector<1x16x112xf32>
      %39 = vector.shape_cast %38 : vector<1x16x112xf32> to vector<16x112xf32>
      %40 = vector.shape_cast %37 : vector<16x112xf32> to vector<1x16x112xf32>
      tpu.vector_store %arg7[%c0_29, %c3, %c16], %40 {strides = array<i32>} : memref<2x22x128xf32, #tpu.memory_space<vmem>>, vector<1x16x112xf32>,
      %c1 = arith.constant 1 : index
      %c0_30 = arith.constant 0 : index
      %c0_31 = arith.constant 0 : index
      %41 = vector.load %arg7[%c1, %c0_30, %c0_31] : memref<2x22x128xf32, #tpu.memory_space<vmem>>, vector<1x3x128xf32>
      %42 = vector.shape_cast %41 : vector<1x3x128xf32> to vector<3x128xf32>
      %43 = vector.shape_cast %30 : vector<3x128xf32> to vector<1x3x128xf32>
      tpu.vector_store %arg7[%c1, %c0_30, %c0_31], %43 {strides = array<i32>} : memref<2x22x128xf32, #tpu.memory_space<vmem>>, vector<1x3x128xf32>,
      %c1_32 = arith.constant 1 : index
      %c19_33 = arith.constant 19 : index
      %c0_34 = arith.constant 0 : index
      %44 = vector.load %arg7[%c1_32, %c19_33, %c0_34] : memref<2x22x128xf32, #tpu.memory_space<vmem>>, vector<1x3x128xf32>
      %45 = vector.shape_cast %44 : vector<1x3x128xf32> to vector<3x128xf32>
      %46 = vector.shape_cast %30 : vector<3x128xf32> to vector<1x3x128xf32>
      tpu.vector_store %arg7[%c1_32, %c19_33, %c0_34], %46 {strides = array<i32>} : memref<2x22x128xf32, #tpu.memory_space<vmem>>, vector<1x3x128xf32>,
      %cst_35 = arith.constant 0.000000e+00 : f32
      %47 = vector.broadcast %cst_35 : f32 to vector<16x112xf32>
      %c1_36 = arith.constant 1 : index
      %c3_37 = arith.constant 3 : index
      %c16_38 = arith.constant 16 : index
      %48 = vector.load %arg7[%c1_36, %c3_37, %c16_38] : memref<2x22x128xf32, #tpu.memory_space<vmem>>, vector<1x16x112xf32>
      %49 = vector.shape_cast %48 : vector<1x16x112xf32> to vector<16x112xf32>
      %50 = vector.shape_cast %47 : vector<16x112xf32> to vector<1x16x112xf32>
      tpu.vector_store %arg7[%c1_36, %c3_37, %c16_38], %50 {strides = array<i32>} : memref<2x22x128xf32, #tpu.memory_space<vmem>>, vector<1x16x112xf32>,
      %c0_39 = arith.constant 0 : index
      %c3_40 = arith.constant 3 : index
      %c0_41 = arith.constant 0 : index
      %51 = vector.load %arg7[%c0_39, %c3_40, %c0_41] : memref<2x22x128xf32, #tpu.memory_space<vmem>>, vector<1x16x16xf32>
      %52 = vector.shape_cast %51 : vector<1x16x16xf32> to vector<16x16xf32>
      %53 = vector.shape_cast %28 : vector<16x16xf32> to vector<1x16x16xf32>
      tpu.vector_store %arg7[%c0_39, %c3_40, %c0_41], %53 {strides = array<i32>} : memref<2x22x128xf32, #tpu.memory_space<vmem>>, vector<1x16x16xf32>,
      %c1_42 = arith.constant 1 : index
      %c3_43 = arith.constant 3 : index
      %c0_44 = arith.constant 0 : index
      %54 = vector.load %arg7[%c1_42, %c3_43, %c0_44] : memref<2x22x128xf32, #tpu.memory_space<vmem>>, vector<1x16x16xf32>
      %55 = vector.shape_cast %54 : vector<1x16x16xf32> to vector<16x16xf32>
      %56 = vector.shape_cast %29 : vector<16x16xf32> to vector<1x16x16xf32>
      tpu.vector_store %arg7[%c1_42, %c3_43, %c0_44], %56 {strides = array<i32>} : memref<2x22x128xf32, #tpu.memory_space<vmem>>, vector<1x16x16xf32>,
      %c0_45 = arith.constant 0 : index
      %c0_46 = arith.constant 0 : index
      %c0_47 = arith.constant 0 : index
      %57 = vector.load %arg7[%c0_45, %c0_46, %c0_47] : memref<2x22x128xf32, #tpu.memory_space<vmem>>, vector<1x16x128xf32>
      %58 = vector.shape_cast %57 : vector<1x16x128xf32> to vector<16x128xf32>
      %c0_48 = arith.constant 0 : index
      %c1_49 = arith.constant 1 : index
      %c0_50 = arith.constant 0 : index
      %59 = vector.load %arg7[%c0_48, %c1_49, %c0_50] : memref<2x22x128xf32, #tpu.memory_space<vmem>>, vector<1x16x128xf32>
      %60 = vector.shape_cast %59 : vector<1x16x128xf32> to vector<16x128xf32>
      %c0_51 = arith.constant 0 : index
      %c2 = arith.constant 2 : index
      %c0_52 = arith.constant 0 : index
      %61 = vector.load %arg7[%c0_51, %c2, %c0_52] : memref<2x22x128xf32, #tpu.memory_space<vmem>>, vector<1x16x128xf32>
      %62 = vector.shape_cast %61 : vector<1x16x128xf32> to vector<16x128xf32>
      %c0_53 = arith.constant 0 : index
      %c3_54 = arith.constant 3 : index
      %c0_55 = arith.constant 0 : index
      %63 = vector.load %arg7[%c0_53, %c3_54, %c0_55] : memref<2x22x128xf32, #tpu.memory_space<vmem>>, vector<1x16x128xf32>
      %64 = vector.shape_cast %63 : vector<1x16x128xf32> to vector<16x128xf32>
      %c0_56 = arith.constant 0 : index
      %c4 = arith.constant 4 : index
      %c0_57 = arith.constant 0 : index
      %65 = vector.load %arg7[%c0_56, %c4, %c0_57] : memref<2x22x128xf32, #tpu.memory_space<vmem>>, vector<1x16x128xf32>
      %66 = vector.shape_cast %65 : vector<1x16x128xf32> to vector<16x128xf32>
      %c0_58 = arith.constant 0 : index
      %c5 = arith.constant 5 : index
      %c0_59 = arith.constant 0 : index
      %67 = vector.load %arg7[%c0_58, %c5, %c0_59] : memref<2x22x128xf32, #tpu.memory_space<vmem>>, vector<1x16x128xf32>
      %68 = vector.shape_cast %67 : vector<1x16x128xf32> to vector<16x128xf32>
      %c0_60 = arith.constant 0 : index
      %c6 = arith.constant 6 : index
      %c0_61 = arith.constant 0 : index
      %69 = vector.load %arg7[%c0_60, %c6, %c0_61] : memref<2x22x128xf32, #tpu.memory_space<vmem>>, vector<1x16x128xf32>
      %70 = vector.shape_cast %69 : vector<1x16x128xf32> to vector<16x128xf32>
      %c1_62 = arith.constant 1 : index
      %c0_63 = arith.constant 0 : index
      %c0_64 = arith.constant 0 : index
      %71 = vector.load %arg7[%c1_62, %c0_63, %c0_64] : memref<2x22x128xf32, #tpu.memory_space<vmem>>, vector<1x16x128xf32>
      %72 = vector.shape_cast %71 : vector<1x16x128xf32> to vector<16x128xf32>
      %c1_65 = arith.constant 1 : index
      %c1_66 = arith.constant 1 : index
      %c0_67 = arith.constant 0 : index
      %73 = vector.load %arg7[%c1_65, %c1_66, %c0_67] : memref<2x22x128xf32, #tpu.memory_space<vmem>>, vector<1x16x128xf32>
      %74 = vector.shape_cast %73 : vector<1x16x128xf32> to vector<16x128xf32>
      %c1_68 = arith.constant 1 : index
      %c2_69 = arith.constant 2 : index
      %c0_70 = arith.constant 0 : index
      %75 = vector.load %arg7[%c1_68, %c2_69, %c0_70] : memref<2x22x128xf32, #tpu.memory_space<vmem>>, vector<1x16x128xf32>
      %76 = vector.shape_cast %75 : vector<1x16x128xf32> to vector<16x128xf32>
      %c1_71 = arith.constant 1 : index
      %c3_72 = arith.constant 3 : index
      %c0_73 = arith.constant 0 : index
      %77 = vector.load %arg7[%c1_71, %c3_72, %c0_73] : memref<2x22x128xf32, #tpu.memory_space<vmem>>, vector<1x16x128xf32>
      %78 = vector.shape_cast %77 : vector<1x16x128xf32> to vector<16x128xf32>
      %c1_74 = arith.constant 1 : index
      %c4_75 = arith.constant 4 : index
      %c0_76 = arith.constant 0 : index
      %79 = vector.load %arg7[%c1_74, %c4_75, %c0_76] : memref<2x22x128xf32, #tpu.memory_space<vmem>>, vector<1x16x128xf32>
      %80 = vector.shape_cast %79 : vector<1x16x128xf32> to vector<16x128xf32>
      %c1_77 = arith.constant 1 : index
      %c5_78 = arith.constant 5 : index
      %c0_79 = arith.constant 0 : index
      %81 = vector.load %arg7[%c1_77, %c5_78, %c0_79] : memref<2x22x128xf32, #tpu.memory_space<vmem>>, vector<1x16x128xf32>
      %82 = vector.shape_cast %81 : vector<1x16x128xf32> to vector<16x128xf32>
      %c1_80 = arith.constant 1 : index
      %c6_81 = arith.constant 6 : index
      %c0_82 = arith.constant 0 : index
      %83 = vector.load %arg7[%c1_80, %c6_81, %c0_82] : memref<2x22x128xf32, #tpu.memory_space<vmem>>, vector<1x16x128xf32>
      %84 = vector.shape_cast %83 : vector<1x16x128xf32> to vector<16x128xf32>
      %c0_83 = arith.constant 0 : index
      %85 = memref.load %arg3[%c0_83] : memref<98xf32, #tpu.memory_space<smem>>
      %86 = vector.broadcast %85 : f32 to vector<16x128xf32>
      %87 = arith.mulf %58, %86 : vector<16x128xf32>
      %c7 = arith.constant 7 : index
      %88 = memref.load %arg3[%c7] : memref<98xf32, #tpu.memory_space<smem>>
      %89 = vector.broadcast %88 : f32 to vector<16x128xf32>
      %90 = arith.mulf %60, %89 : vector<16x128xf32>
      %91 = arith.addf %87, %90 : vector<16x128xf32>
      %c14 = arith.constant 14 : index
      %92 = memref.load %arg3[%c14] : memref<98xf32, #tpu.memory_space<smem>>
      %93 = vector.broadcast %92 : f32 to vector<16x128xf32>
      %94 = arith.mulf %62, %93 : vector<16x128xf32>
      %95 = arith.addf %91, %94 : vector<16x128xf32>
      %c21 = arith.constant 21 : index
      %96 = memref.load %arg3[%c21] : memref<98xf32, #tpu.memory_space<smem>>
      %97 = vector.broadcast %96 : f32 to vector<16x128xf32>
      %98 = arith.mulf %64, %97 : vector<16x128xf32>
      %99 = arith.addf %95, %98 : vector<16x128xf32>
      %c28 = arith.constant 28 : index
      %100 = memref.load %arg3[%c28] : memref<98xf32, #tpu.memory_space<smem>>
      %101 = vector.broadcast %100 : f32 to vector<16x128xf32>
      %102 = arith.mulf %66, %101 : vector<16x128xf32>
      %103 = arith.addf %99, %102 : vector<16x128xf32>
      %c35 = arith.constant 35 : index
      %104 = memref.load %arg3[%c35] : memref<98xf32, #tpu.memory_space<smem>>
      %105 = vector.broadcast %104 : f32 to vector<16x128xf32>
      %106 = arith.mulf %68, %105 : vector<16x128xf32>
      %107 = arith.addf %103, %106 : vector<16x128xf32>
      %c42 = arith.constant 42 : index
      %108 = memref.load %arg3[%c42] : memref<98xf32, #tpu.memory_space<smem>>
      %109 = vector.broadcast %108 : f32 to vector<16x128xf32>
      %110 = arith.mulf %70, %109 : vector<16x128xf32>
      %111 = arith.addf %107, %110 : vector<16x128xf32>
      %c49 = arith.constant 49 : index
      %112 = memref.load %arg3[%c49] : memref<98xf32, #tpu.memory_space<smem>>
      %113 = vector.broadcast %112 : f32 to vector<16x128xf32>
      %114 = arith.mulf %72, %113 : vector<16x128xf32>
      %115 = arith.addf %111, %114 : vector<16x128xf32>
      %c56 = arith.constant 56 : index
      %116 = memref.load %arg3[%c56] : memref<98xf32, #tpu.memory_space<smem>>
      %117 = vector.broadcast %116 : f32 to vector<16x128xf32>
      %118 = arith.mulf %74, %117 : vector<16x128xf32>
      %119 = arith.addf %115, %118 : vector<16x128xf32>
      %c63 = arith.constant 63 : index
      %120 = memref.load %arg3[%c63] : memref<98xf32, #tpu.memory_space<smem>>
      %121 = vector.broadcast %120 : f32 to vector<16x128xf32>
      %122 = arith.mulf %76, %121 : vector<16x128xf32>
      %123 = arith.addf %119, %122 : vector<16x128xf32>
      %c70 = arith.constant 70 : index
      %124 = memref.load %arg3[%c70] : memref<98xf32, #tpu.memory_space<smem>>
      %125 = vector.broadcast %124 : f32 to vector<16x128xf32>
      %126 = arith.mulf %78, %125 : vector<16x128xf32>
      %127 = arith.addf %123, %126 : vector<16x128xf32>
      %c77 = arith.constant 77 : index
      %128 = memref.load %arg3[%c77] : memref<98xf32, #tpu.memory_space<smem>>
      %129 = vector.broadcast %128 : f32 to vector<16x128xf32>
      %130 = arith.mulf %80, %129 : vector<16x128xf32>
      %131 = arith.addf %127, %130 : vector<16x128xf32>
      %c84 = arith.constant 84 : index
      %132 = memref.load %arg3[%c84] : memref<98xf32, #tpu.memory_space<smem>>
      %133 = vector.broadcast %132 : f32 to vector<16x128xf32>
      %134 = arith.mulf %82, %133 : vector<16x128xf32>
      %135 = arith.addf %131, %134 : vector<16x128xf32>
      %c91 = arith.constant 91 : index
      %136 = memref.load %arg3[%c91] : memref<98xf32, #tpu.memory_space<smem>>
      %137 = vector.broadcast %136 : f32 to vector<16x128xf32>
      %138 = arith.mulf %84, %137 : vector<16x128xf32>
      %139 = arith.addf %135, %138 : vector<16x128xf32>
      %c3_i32_84 = arith.constant 3 : i32
      %140 = tpu.dynamic_rotate %139 by %c3_i32_84 dim 1 : vector<16x128xf32>, i32 -> vector<16x128xf32>
      %c1_85 = arith.constant 1 : index
      %141 = memref.load %arg3[%c1_85] : memref<98xf32, #tpu.memory_space<smem>>
      %142 = vector.broadcast %141 : f32 to vector<16x128xf32>
      %143 = arith.mulf %58, %142 : vector<16x128xf32>
      %c8 = arith.constant 8 : index
      %144 = memref.load %arg3[%c8] : memref<98xf32, #tpu.memory_space<smem>>
      %145 = vector.broadcast %144 : f32 to vector<16x128xf32>
      %146 = arith.mulf %60, %145 : vector<16x128xf32>
      %147 = arith.addf %143, %146 : vector<16x128xf32>
      %c15 = arith.constant 15 : index
      %148 = memref.load %arg3[%c15] : memref<98xf32, #tpu.memory_space<smem>>
      %149 = vector.broadcast %148 : f32 to vector<16x128xf32>
      %150 = arith.mulf %62, %149 : vector<16x128xf32>
      %151 = arith.addf %147, %150 : vector<16x128xf32>
      %c22 = arith.constant 22 : index
      %152 = memref.load %arg3[%c22] : memref<98xf32, #tpu.memory_space<smem>>
      %153 = vector.broadcast %152 : f32 to vector<16x128xf32>
      %154 = arith.mulf %64, %153 : vector<16x128xf32>
      %155 = arith.addf %151, %154 : vector<16x128xf32>
      %c29 = arith.constant 29 : index
      %156 = memref.load %arg3[%c29] : memref<98xf32, #tpu.memory_space<smem>>
      %157 = vector.broadcast %156 : f32 to vector<16x128xf32>
      %158 = arith.mulf %66, %157 : vector<16x128xf32>
      %159 = arith.addf %155, %158 : vector<16x128xf32>
      %c36 = arith.constant 36 : index
      %160 = memref.load %arg3[%c36] : memref<98xf32, #tpu.memory_space<smem>>
      %161 = vector.broadcast %160 : f32 to vector<16x128xf32>
      %162 = arith.mulf %68, %161 : vector<16x128xf32>
      %163 = arith.addf %159, %162 : vector<16x128xf32>
      %c43 = arith.constant 43 : index
      %164 = memref.load %arg3[%c43] : memref<98xf32, #tpu.memory_space<smem>>
      %165 = vector.broadcast %164 : f32 to vector<16x128xf32>
      %166 = arith.mulf %70, %165 : vector<16x128xf32>
      %167 = arith.addf %163, %166 : vector<16x128xf32>
      %c50 = arith.constant 50 : index
      %168 = memref.load %arg3[%c50] : memref<98xf32, #tpu.memory_space<smem>>
      %169 = vector.broadcast %168 : f32 to vector<16x128xf32>
      %170 = arith.mulf %72, %169 : vector<16x128xf32>
      %171 = arith.addf %167, %170 : vector<16x128xf32>
      %c57 = arith.constant 57 : index
      %172 = memref.load %arg3[%c57] : memref<98xf32, #tpu.memory_space<smem>>
      %173 = vector.broadcast %172 : f32 to vector<16x128xf32>
      %174 = arith.mulf %74, %173 : vector<16x128xf32>
      %175 = arith.addf %171, %174 : vector<16x128xf32>
      %c64 = arith.constant 64 : index
      %176 = memref.load %arg3[%c64] : memref<98xf32, #tpu.memory_space<smem>>
      %177 = vector.broadcast %176 : f32 to vector<16x128xf32>
      %178 = arith.mulf %76, %177 : vector<16x128xf32>
      %179 = arith.addf %175, %178 : vector<16x128xf32>
      %c71 = arith.constant 71 : index
      %180 = memref.load %arg3[%c71] : memref<98xf32, #tpu.memory_space<smem>>
      %181 = vector.broadcast %180 : f32 to vector<16x128xf32>
      %182 = arith.mulf %78, %181 : vector<16x128xf32>
      %183 = arith.addf %179, %182 : vector<16x128xf32>
      %c78 = arith.constant 78 : index
      %184 = memref.load %arg3[%c78] : memref<98xf32, #tpu.memory_space<smem>>
      %185 = vector.broadcast %184 : f32 to vector<16x128xf32>
      %186 = arith.mulf %80, %185 : vector<16x128xf32>
      %187 = arith.addf %183, %186 : vector<16x128xf32>
      %c85 = arith.constant 85 : index
      %188 = memref.load %arg3[%c85] : memref<98xf32, #tpu.memory_space<smem>>
      %189 = vector.broadcast %188 : f32 to vector<16x128xf32>
      %190 = arith.mulf %82, %189 : vector<16x128xf32>
      %191 = arith.addf %187, %190 : vector<16x128xf32>
      %c92 = arith.constant 92 : index
      %192 = memref.load %arg3[%c92] : memref<98xf32, #tpu.memory_space<smem>>
      %193 = vector.broadcast %192 : f32 to vector<16x128xf32>
      %194 = arith.mulf %84, %193 : vector<16x128xf32>
      %195 = arith.addf %191, %194 : vector<16x128xf32>
      %c2_i32_86 = arith.constant 2 : i32
      %196 = tpu.dynamic_rotate %195 by %c2_i32_86 dim 1 : vector<16x128xf32>, i32 -> vector<16x128xf32>
      %197 = arith.addf %140, %196 : vector<16x128xf32>
      %c2_87 = arith.constant 2 : index
      %198 = memref.load %arg3[%c2_87] : memref<98xf32, #tpu.memory_space<smem>>
      %199 = vector.broadcast %198 : f32 to vector<16x128xf32>
      %200 = arith.mulf %58, %199 : vector<16x128xf32>
      %c9 = arith.constant 9 : index
      %201 = memref.load %arg3[%c9] : memref<98xf32, #tpu.memory_space<smem>>
      %202 = vector.broadcast %201 : f32 to vector<16x128xf32>
      %203 = arith.mulf %60, %202 : vector<16x128xf32>
      %204 = arith.addf %200, %203 : vector<16x128xf32>
      %c16_88 = arith.constant 16 : index
      %205 = memref.load %arg3[%c16_88] : memref<98xf32, #tpu.memory_space<smem>>
      %206 = vector.broadcast %205 : f32 to vector<16x128xf32>
      %207 = arith.mulf %62, %206 : vector<16x128xf32>
      %208 = arith.addf %204, %207 : vector<16x128xf32>
      %c23 = arith.constant 23 : index
      %209 = memref.load %arg3[%c23] : memref<98xf32, #tpu.memory_space<smem>>
      %210 = vector.broadcast %209 : f32 to vector<16x128xf32>
      %211 = arith.mulf %64, %210 : vector<16x128xf32>
      %212 = arith.addf %208, %211 : vector<16x128xf32>
      %c30 = arith.constant 30 : index
      %213 = memref.load %arg3[%c30] : memref<98xf32, #tpu.memory_space<smem>>
      %214 = vector.broadcast %213 : f32 to vector<16x128xf32>
      %215 = arith.mulf %66, %214 : vector<16x128xf32>
      %216 = arith.addf %212, %215 : vector<16x128xf32>
      %c37 = arith.constant 37 : index
      %217 = memref.load %arg3[%c37] : memref<98xf32, #tpu.memory_space<smem>>
      %218 = vector.broadcast %217 : f32 to vector<16x128xf32>
      %219 = arith.mulf %68, %218 : vector<16x128xf32>
      %220 = arith.addf %216, %219 : vector<16x128xf32>
      %c44 = arith.constant 44 : index
      %221 = memref.load %arg3[%c44] : memref<98xf32, #tpu.memory_space<smem>>
      %222 = vector.broadcast %221 : f32 to vector<16x128xf32>
      %223 = arith.mulf %70, %222 : vector<16x128xf32>
      %224 = arith.addf %220, %223 : vector<16x128xf32>
      %c51 = arith.constant 51 : index
      %225 = memref.load %arg3[%c51] : memref<98xf32, #tpu.memory_space<smem>>
      %226 = vector.broadcast %225 : f32 to vector<16x128xf32>
      %227 = arith.mulf %72, %226 : vector<16x128xf32>
      %228 = arith.addf %224, %227 : vector<16x128xf32>
      %c58 = arith.constant 58 : index
      %229 = memref.load %arg3[%c58] : memref<98xf32, #tpu.memory_space<smem>>
      %230 = vector.broadcast %229 : f32 to vector<16x128xf32>
      %231 = arith.mulf %74, %230 : vector<16x128xf32>
      %232 = arith.addf %228, %231 : vector<16x128xf32>
      %c65 = arith.constant 65 : index
      %233 = memref.load %arg3[%c65] : memref<98xf32, #tpu.memory_space<smem>>
      %234 = vector.broadcast %233 : f32 to vector<16x128xf32>
      %235 = arith.mulf %76, %234 : vector<16x128xf32>
      %236 = arith.addf %232, %235 : vector<16x128xf32>
      %c72 = arith.constant 72 : index
      %237 = memref.load %arg3[%c72] : memref<98xf32, #tpu.memory_space<smem>>
      %238 = vector.broadcast %237 : f32 to vector<16x128xf32>
      %239 = arith.mulf %78, %238 : vector<16x128xf32>
      %240 = arith.addf %236, %239 : vector<16x128xf32>
      %c79 = arith.constant 79 : index
      %241 = memref.load %arg3[%c79] : memref<98xf32, #tpu.memory_space<smem>>
      %242 = vector.broadcast %241 : f32 to vector<16x128xf32>
      %243 = arith.mulf %80, %242 : vector<16x128xf32>
      %244 = arith.addf %240, %243 : vector<16x128xf32>
      %c86 = arith.constant 86 : index
      %245 = memref.load %arg3[%c86] : memref<98xf32, #tpu.memory_space<smem>>
      %246 = vector.broadcast %245 : f32 to vector<16x128xf32>
      %247 = arith.mulf %82, %246 : vector<16x128xf32>
      %248 = arith.addf %244, %247 : vector<16x128xf32>
      %c93 = arith.constant 93 : index
      %249 = memref.load %arg3[%c93] : memref<98xf32, #tpu.memory_space<smem>>
      %250 = vector.broadcast %249 : f32 to vector<16x128xf32>
      %251 = arith.mulf %84, %250 : vector<16x128xf32>
      %252 = arith.addf %248, %251 : vector<16x128xf32>
      %c1_i32_89 = arith.constant 1 : i32
      %253 = tpu.dynamic_rotate %252 by %c1_i32_89 dim 1 : vector<16x128xf32>, i32 -> vector<16x128xf32>
      %254 = arith.addf %197, %253 : vector<16x128xf32>
      %c3_90 = arith.constant 3 : index
      %255 = memref.load %arg3[%c3_90] : memref<98xf32, #tpu.memory_space<smem>>
      %256 = vector.broadcast %255 : f32 to vector<16x128xf32>
      %257 = arith.mulf %58, %256 : vector<16x128xf32>
      %c10 = arith.constant 10 : index
      %258 = memref.load %arg3[%c10] : memref<98xf32, #tpu.memory_space<smem>>
      %259 = vector.broadcast %258 : f32 to vector<16x128xf32>
      %260 = arith.mulf %60, %259 : vector<16x128xf32>
      %261 = arith.addf %257, %260 : vector<16x128xf32>
      %c17 = arith.constant 17 : index
      %262 = memref.load %arg3[%c17] : memref<98xf32, #tpu.memory_space<smem>>
      %263 = vector.broadcast %262 : f32 to vector<16x128xf32>
      %264 = arith.mulf %62, %263 : vector<16x128xf32>
      %265 = arith.addf %261, %264 : vector<16x128xf32>
      %c24 = arith.constant 24 : index
      %266 = memref.load %arg3[%c24] : memref<98xf32, #tpu.memory_space<smem>>
      %267 = vector.broadcast %266 : f32 to vector<16x128xf32>
      %268 = arith.mulf %64, %267 : vector<16x128xf32>
      %269 = arith.addf %265, %268 : vector<16x128xf32>
      %c31 = arith.constant 31 : index
      %270 = memref.load %arg3[%c31] : memref<98xf32, #tpu.memory_space<smem>>
      %271 = vector.broadcast %270 : f32 to vector<16x128xf32>
      %272 = arith.mulf %66, %271 : vector<16x128xf32>
      %273 = arith.addf %269, %272 : vector<16x128xf32>
      %c38 = arith.constant 38 : index
      %274 = memref.load %arg3[%c38] : memref<98xf32, #tpu.memory_space<smem>>
      %275 = vector.broadcast %274 : f32 to vector<16x128xf32>
      %276 = arith.mulf %68, %275 : vector<16x128xf32>
      %277 = arith.addf %273, %276 : vector<16x128xf32>
      %c45 = arith.constant 45 : index
      %278 = memref.load %arg3[%c45] : memref<98xf32, #tpu.memory_space<smem>>
      %279 = vector.broadcast %278 : f32 to vector<16x128xf32>
      %280 = arith.mulf %70, %279 : vector<16x128xf32>
      %281 = arith.addf %277, %280 : vector<16x128xf32>
      %c52 = arith.constant 52 : index
      %282 = memref.load %arg3[%c52] : memref<98xf32, #tpu.memory_space<smem>>
      %283 = vector.broadcast %282 : f32 to vector<16x128xf32>
      %284 = arith.mulf %72, %283 : vector<16x128xf32>
      %285 = arith.addf %281, %284 : vector<16x128xf32>
      %c59 = arith.constant 59 : index
      %286 = memref.load %arg3[%c59] : memref<98xf32, #tpu.memory_space<smem>>
      %287 = vector.broadcast %286 : f32 to vector<16x128xf32>
      %288 = arith.mulf %74, %287 : vector<16x128xf32>
      %289 = arith.addf %285, %288 : vector<16x128xf32>
      %c66 = arith.constant 66 : index
      %290 = memref.load %arg3[%c66] : memref<98xf32, #tpu.memory_space<smem>>
      %291 = vector.broadcast %290 : f32 to vector<16x128xf32>
      %292 = arith.mulf %76, %291 : vector<16x128xf32>
      %293 = arith.addf %289, %292 : vector<16x128xf32>
      %c73 = arith.constant 73 : index
      %294 = memref.load %arg3[%c73] : memref<98xf32, #tpu.memory_space<smem>>
      %295 = vector.broadcast %294 : f32 to vector<16x128xf32>
      %296 = arith.mulf %78, %295 : vector<16x128xf32>
      %297 = arith.addf %293, %296 : vector<16x128xf32>
      %c80 = arith.constant 80 : index
      %298 = memref.load %arg3[%c80] : memref<98xf32, #tpu.memory_space<smem>>
      %299 = vector.broadcast %298 : f32 to vector<16x128xf32>
      %300 = arith.mulf %80, %299 : vector<16x128xf32>
      %301 = arith.addf %297, %300 : vector<16x128xf32>
      %c87 = arith.constant 87 : index
      %302 = memref.load %arg3[%c87] : memref<98xf32, #tpu.memory_space<smem>>
      %303 = vector.broadcast %302 : f32 to vector<16x128xf32>
      %304 = arith.mulf %82, %303 : vector<16x128xf32>
      %305 = arith.addf %301, %304 : vector<16x128xf32>
      %c94 = arith.constant 94 : index
      %306 = memref.load %arg3[%c94] : memref<98xf32, #tpu.memory_space<smem>>
      %307 = vector.broadcast %306 : f32 to vector<16x128xf32>
      %308 = arith.mulf %84, %307 : vector<16x128xf32>
      %309 = arith.addf %305, %308 : vector<16x128xf32>
      %310 = arith.addf %254, %309 : vector<16x128xf32>
      %c4_91 = arith.constant 4 : index
      %311 = memref.load %arg3[%c4_91] : memref<98xf32, #tpu.memory_space<smem>>
      %312 = vector.broadcast %311 : f32 to vector<16x128xf32>
      %313 = arith.mulf %58, %312 : vector<16x128xf32>
      %c11 = arith.constant 11 : index
      %314 = memref.load %arg3[%c11] : memref<98xf32, #tpu.memory_space<smem>>
      %315 = vector.broadcast %314 : f32 to vector<16x128xf32>
      %316 = arith.mulf %60, %315 : vector<16x128xf32>
      %317 = arith.addf %313, %316 : vector<16x128xf32>
      %c18 = arith.constant 18 : index
      %318 = memref.load %arg3[%c18] : memref<98xf32, #tpu.memory_space<smem>>
      %319 = vector.broadcast %318 : f32 to vector<16x128xf32>
      %320 = arith.mulf %62, %319 : vector<16x128xf32>
      %321 = arith.addf %317, %320 : vector<16x128xf32>
      %c25 = arith.constant 25 : index
      %322 = memref.load %arg3[%c25] : memref<98xf32, #tpu.memory_space<smem>>
      %323 = vector.broadcast %322 : f32 to vector<16x128xf32>
      %324 = arith.mulf %64, %323 : vector<16x128xf32>
      %325 = arith.addf %321, %324 : vector<16x128xf32>
      %c32 = arith.constant 32 : index
      %326 = memref.load %arg3[%c32] : memref<98xf32, #tpu.memory_space<smem>>
      %327 = vector.broadcast %326 : f32 to vector<16x128xf32>
      %328 = arith.mulf %66, %327 : vector<16x128xf32>
      %329 = arith.addf %325, %328 : vector<16x128xf32>
      %c39 = arith.constant 39 : index
      %330 = memref.load %arg3[%c39] : memref<98xf32, #tpu.memory_space<smem>>
      %331 = vector.broadcast %330 : f32 to vector<16x128xf32>
      %332 = arith.mulf %68, %331 : vector<16x128xf32>
      %333 = arith.addf %329, %332 : vector<16x128xf32>
      %c46 = arith.constant 46 : index
      %334 = memref.load %arg3[%c46] : memref<98xf32, #tpu.memory_space<smem>>
      %335 = vector.broadcast %334 : f32 to vector<16x128xf32>
      %336 = arith.mulf %70, %335 : vector<16x128xf32>
      %337 = arith.addf %333, %336 : vector<16x128xf32>
      %c53 = arith.constant 53 : index
      %338 = memref.load %arg3[%c53] : memref<98xf32, #tpu.memory_space<smem>>
      %339 = vector.broadcast %338 : f32 to vector<16x128xf32>
      %340 = arith.mulf %72, %339 : vector<16x128xf32>
      %341 = arith.addf %337, %340 : vector<16x128xf32>
      %c60 = arith.constant 60 : index
      %342 = memref.load %arg3[%c60] : memref<98xf32, #tpu.memory_space<smem>>
      %343 = vector.broadcast %342 : f32 to vector<16x128xf32>
      %344 = arith.mulf %74, %343 : vector<16x128xf32>
      %345 = arith.addf %341, %344 : vector<16x128xf32>
      %c67 = arith.constant 67 : index
      %346 = memref.load %arg3[%c67] : memref<98xf32, #tpu.memory_space<smem>>
      %347 = vector.broadcast %346 : f32 to vector<16x128xf32>
      %348 = arith.mulf %76, %347 : vector<16x128xf32>
      %349 = arith.addf %345, %348 : vector<16x128xf32>
      %c74 = arith.constant 74 : index
      %350 = memref.load %arg3[%c74] : memref<98xf32, #tpu.memory_space<smem>>
      %351 = vector.broadcast %350 : f32 to vector<16x128xf32>
      %352 = arith.mulf %78, %351 : vector<16x128xf32>
      %353 = arith.addf %349, %352 : vector<16x128xf32>
      %c81 = arith.constant 81 : index
      %354 = memref.load %arg3[%c81] : memref<98xf32, #tpu.memory_space<smem>>
      %355 = vector.broadcast %354 : f32 to vector<16x128xf32>
      %356 = arith.mulf %80, %355 : vector<16x128xf32>
      %357 = arith.addf %353, %356 : vector<16x128xf32>
      %c88 = arith.constant 88 : index
      %358 = memref.load %arg3[%c88] : memref<98xf32, #tpu.memory_space<smem>>
      %359 = vector.broadcast %358 : f32 to vector<16x128xf32>
      %360 = arith.mulf %82, %359 : vector<16x128xf32>
      %361 = arith.addf %357, %360 : vector<16x128xf32>
      %c95 = arith.constant 95 : index
      %362 = memref.load %arg3[%c95] : memref<98xf32, #tpu.memory_space<smem>>
      %363 = vector.broadcast %362 : f32 to vector<16x128xf32>
      %364 = arith.mulf %84, %363 : vector<16x128xf32>
      %365 = arith.addf %361, %364 : vector<16x128xf32>
      %c127_i32 = arith.constant 127 : i32
      %366 = tpu.dynamic_rotate %365 by %c127_i32 dim 1 : vector<16x128xf32>, i32 -> vector<16x128xf32>
      %367 = arith.addf %310, %366 : vector<16x128xf32>
      %c5_92 = arith.constant 5 : index
      %368 = memref.load %arg3[%c5_92] : memref<98xf32, #tpu.memory_space<smem>>
      %369 = vector.broadcast %368 : f32 to vector<16x128xf32>
      %370 = arith.mulf %58, %369 : vector<16x128xf32>
      %c12 = arith.constant 12 : index
      %371 = memref.load %arg3[%c12] : memref<98xf32, #tpu.memory_space<smem>>
      %372 = vector.broadcast %371 : f32 to vector<16x128xf32>
      %373 = arith.mulf %60, %372 : vector<16x128xf32>
      %374 = arith.addf %370, %373 : vector<16x128xf32>
      %c19_93 = arith.constant 19 : index
      %375 = memref.load %arg3[%c19_93] : memref<98xf32, #tpu.memory_space<smem>>
      %376 = vector.broadcast %375 : f32 to vector<16x128xf32>
      %377 = arith.mulf %62, %376 : vector<16x128xf32>
      %378 = arith.addf %374, %377 : vector<16x128xf32>
      %c26 = arith.constant 26 : index
      %379 = memref.load %arg3[%c26] : memref<98xf32, #tpu.memory_space<smem>>
      %380 = vector.broadcast %379 : f32 to vector<16x128xf32>
      %381 = arith.mulf %64, %380 : vector<16x128xf32>
      %382 = arith.addf %378, %381 : vector<16x128xf32>
      %c33 = arith.constant 33 : index
      %383 = memref.load %arg3[%c33] : memref<98xf32, #tpu.memory_space<smem>>
      %384 = vector.broadcast %383 : f32 to vector<16x128xf32>
      %385 = arith.mulf %66, %384 : vector<16x128xf32>
      %386 = arith.addf %382, %385 : vector<16x128xf32>
      %c40 = arith.constant 40 : index
      %387 = memref.load %arg3[%c40] : memref<98xf32, #tpu.memory_space<smem>>
      %388 = vector.broadcast %387 : f32 to vector<16x128xf32>
      %389 = arith.mulf %68, %388 : vector<16x128xf32>
      %390 = arith.addf %386, %389 : vector<16x128xf32>
      %c47 = arith.constant 47 : index
      %391 = memref.load %arg3[%c47] : memref<98xf32, #tpu.memory_space<smem>>
      %392 = vector.broadcast %391 : f32 to vector<16x128xf32>
      %393 = arith.mulf %70, %392 : vector<16x128xf32>
      %394 = arith.addf %390, %393 : vector<16x128xf32>
      %c54 = arith.constant 54 : index
      %395 = memref.load %arg3[%c54] : memref<98xf32, #tpu.memory_space<smem>>
      %396 = vector.broadcast %395 : f32 to vector<16x128xf32>
      %397 = arith.mulf %72, %396 : vector<16x128xf32>
      %398 = arith.addf %394, %397 : vector<16x128xf32>
      %c61 = arith.constant 61 : index
      %399 = memref.load %arg3[%c61] : memref<98xf32, #tpu.memory_space<smem>>
      %400 = vector.broadcast %399 : f32 to vector<16x128xf32>
      %401 = arith.mulf %74, %400 : vector<16x128xf32>
      %402 = arith.addf %398, %401 : vector<16x128xf32>
      %c68 = arith.constant 68 : index
      %403 = memref.load %arg3[%c68] : memref<98xf32, #tpu.memory_space<smem>>
      %404 = vector.broadcast %403 : f32 to vector<16x128xf32>
      %405 = arith.mulf %76, %404 : vector<16x128xf32>
      %406 = arith.addf %402, %405 : vector<16x128xf32>
      %c75 = arith.constant 75 : index
      %407 = memref.load %arg3[%c75] : memref<98xf32, #tpu.memory_space<smem>>
      %408 = vector.broadcast %407 : f32 to vector<16x128xf32>
      %409 = arith.mulf %78, %408 : vector<16x128xf32>
      %410 = arith.addf %406, %409 : vector<16x128xf32>
      %c82 = arith.constant 82 : index
      %411 = memref.load %arg3[%c82] : memref<98xf32, #tpu.memory_space<smem>>
      %412 = vector.broadcast %411 : f32 to vector<16x128xf32>
      %413 = arith.mulf %80, %412 : vector<16x128xf32>
      %414 = arith.addf %410, %413 : vector<16x128xf32>
      %c89 = arith.constant 89 : index
      %415 = memref.load %arg3[%c89] : memref<98xf32, #tpu.memory_space<smem>>
      %416 = vector.broadcast %415 : f32 to vector<16x128xf32>
      %417 = arith.mulf %82, %416 : vector<16x128xf32>
      %418 = arith.addf %414, %417 : vector<16x128xf32>
      %c96 = arith.constant 96 : index
      %419 = memref.load %arg3[%c96] : memref<98xf32, #tpu.memory_space<smem>>
      %420 = vector.broadcast %419 : f32 to vector<16x128xf32>
      %421 = arith.mulf %84, %420 : vector<16x128xf32>
      %422 = arith.addf %418, %421 : vector<16x128xf32>
      %c126_i32 = arith.constant 126 : i32
      %423 = tpu.dynamic_rotate %422 by %c126_i32 dim 1 : vector<16x128xf32>, i32 -> vector<16x128xf32>
      %424 = arith.addf %367, %423 : vector<16x128xf32>
      %c6_94 = arith.constant 6 : index
      %425 = memref.load %arg3[%c6_94] : memref<98xf32, #tpu.memory_space<smem>>
      %426 = vector.broadcast %425 : f32 to vector<16x128xf32>
      %427 = arith.mulf %58, %426 : vector<16x128xf32>
      %c13 = arith.constant 13 : index
      %428 = memref.load %arg3[%c13] : memref<98xf32, #tpu.memory_space<smem>>
      %429 = vector.broadcast %428 : f32 to vector<16x128xf32>
      %430 = arith.mulf %60, %429 : vector<16x128xf32>
      %431 = arith.addf %427, %430 : vector<16x128xf32>
      %c20 = arith.constant 20 : index
      %432 = memref.load %arg3[%c20] : memref<98xf32, #tpu.memory_space<smem>>
      %433 = vector.broadcast %432 : f32 to vector<16x128xf32>
      %434 = arith.mulf %62, %433 : vector<16x128xf32>
      %435 = arith.addf %431, %434 : vector<16x128xf32>
      %c27 = arith.constant 27 : index
      %436 = memref.load %arg3[%c27] : memref<98xf32, #tpu.memory_space<smem>>
      %437 = vector.broadcast %436 : f32 to vector<16x128xf32>
      %438 = arith.mulf %64, %437 : vector<16x128xf32>
      %439 = arith.addf %435, %438 : vector<16x128xf32>
      %c34 = arith.constant 34 : index
      %440 = memref.load %arg3[%c34] : memref<98xf32, #tpu.memory_space<smem>>
      %441 = vector.broadcast %440 : f32 to vector<16x128xf32>
      %442 = arith.mulf %66, %441 : vector<16x128xf32>
      %443 = arith.addf %439, %442 : vector<16x128xf32>
      %c41 = arith.constant 41 : index
      %444 = memref.load %arg3[%c41] : memref<98xf32, #tpu.memory_space<smem>>
      %445 = vector.broadcast %444 : f32 to vector<16x128xf32>
      %446 = arith.mulf %68, %445 : vector<16x128xf32>
      %447 = arith.addf %443, %446 : vector<16x128xf32>
      %c48 = arith.constant 48 : index
      %448 = memref.load %arg3[%c48] : memref<98xf32, #tpu.memory_space<smem>>
      %449 = vector.broadcast %448 : f32 to vector<16x128xf32>
      %450 = arith.mulf %70, %449 : vector<16x128xf32>
      %451 = arith.addf %447, %450 : vector<16x128xf32>
      %c55 = arith.constant 55 : index
      %452 = memref.load %arg3[%c55] : memref<98xf32, #tpu.memory_space<smem>>
      %453 = vector.broadcast %452 : f32 to vector<16x128xf32>
      %454 = arith.mulf %72, %453 : vector<16x128xf32>
      %455 = arith.addf %451, %454 : vector<16x128xf32>
      %c62 = arith.constant 62 : index
      %456 = memref.load %arg3[%c62] : memref<98xf32, #tpu.memory_space<smem>>
      %457 = vector.broadcast %456 : f32 to vector<16x128xf32>
      %458 = arith.mulf %74, %457 : vector<16x128xf32>
      %459 = arith.addf %455, %458 : vector<16x128xf32>
      %c69 = arith.constant 69 : index
      %460 = memref.load %arg3[%c69] : memref<98xf32, #tpu.memory_space<smem>>
      %461 = vector.broadcast %460 : f32 to vector<16x128xf32>
      %462 = arith.mulf %76, %461 : vector<16x128xf32>
      %463 = arith.addf %459, %462 : vector<16x128xf32>
      %c76 = arith.constant 76 : index
      %464 = memref.load %arg3[%c76] : memref<98xf32, #tpu.memory_space<smem>>
      %465 = vector.broadcast %464 : f32 to vector<16x128xf32>
      %466 = arith.mulf %78, %465 : vector<16x128xf32>
      %467 = arith.addf %463, %466 : vector<16x128xf32>
      %c83 = arith.constant 83 : index
      %468 = memref.load %arg3[%c83] : memref<98xf32, #tpu.memory_space<smem>>
      %469 = vector.broadcast %468 : f32 to vector<16x128xf32>
      %470 = arith.mulf %80, %469 : vector<16x128xf32>
      %471 = arith.addf %467, %470 : vector<16x128xf32>
      %c90 = arith.constant 90 : index
      %472 = memref.load %arg3[%c90] : memref<98xf32, #tpu.memory_space<smem>>
      %473 = vector.broadcast %472 : f32 to vector<16x128xf32>
      %474 = arith.mulf %82, %473 : vector<16x128xf32>
      %475 = arith.addf %471, %474 : vector<16x128xf32>
      %c97 = arith.constant 97 : index
      %476 = memref.load %arg3[%c97] : memref<98xf32, #tpu.memory_space<smem>>
      %477 = vector.broadcast %476 : f32 to vector<16x128xf32>
      %478 = arith.mulf %84, %477 : vector<16x128xf32>
      %479 = arith.addf %475, %478 : vector<16x128xf32>
      %c125_i32 = arith.constant 125 : i32
      %480 = tpu.dynamic_rotate %479 by %c125_i32 dim 1 : vector<16x128xf32>, i32 -> vector<16x128xf32>
      %481 = arith.addf %424, %480 : vector<16x128xf32>
      %482 = vector.extract_strided_slice %481 {offsets = [0, 0], sizes = [16, 16], strides = [1, 1]} : vector<16x128xf32> to vector<16x16xf32>
      %483 = arith.negf %482 : vector<16x16xf32>
      %484 = math.exp %483 : vector<16x16xf32>
      %cst_95 = arith.constant 1.000000e+00 : f32
      %485 = vector.broadcast %cst_95 : f32 to vector<16x16xf32>
      %486 = arith.addf %485, %484 : vector<16x16xf32>
      %487 = arith.divf %485, %486 : vector<16x16xf32>
      %c0_96 = arith.constant 0 : index
      %c0_97 = arith.constant 0 : index
      %c0_98 = arith.constant 0 : index
      %c0_99 = arith.constant 0 : index
      %488 = vector.load %arg4[%c0_96, %c0_97, %c0_98, %c0_99] : memref<1x1x16x16xf32, #tpu.memory_space<vmem>>, vector<1x1x16x16xf32>
      %489 = vector.shape_cast %488 : vector<1x1x16x16xf32> to vector<16x16xf32>
      %490 = vector.shape_cast %487 : vector<16x16xf32> to vector<1x1x16x16xf32>
      tpu.vector_store %arg4[%c0_96, %c0_97, %c0_98, %c0_99], %490 {strides = array<i32>} : memref<1x1x16x16xf32, #tpu.memory_space<vmem>>, vector<1x1x16x16xf32>,
    } else {
    }
    return
  }
  func.func @transform_0(%arg0: i32, %arg1: i32) -> (i32, i32, i32, i32) {
    %c0_i32 = arith.constant 0 : i32
    %c0_i32_0 = arith.constant 0 : i32
    %c0_i32_1 = arith.constant 0 : i32
    return %arg0, %arg1, %c0_i32, %c0_i32_0 : i32, i32, i32, i32
  }
  func.func @transform_1(%arg0: i32, %arg1: i32) -> i32 {
    %c0_i32 = arith.constant 0 : i32
    %c0_i32_0 = arith.constant 0 : i32
    return %c0_i32 : i32
  }
  func.func @transform_2(%arg0: i32, %arg1: i32) -> (i32, i32, i32, i32) {
    %c0_i32 = arith.constant 0 : i32
    %c0_i32_0 = arith.constant 0 : i32
    %c0_i32_1 = arith.constant 0 : i32
    %c0_i32_2 = arith.constant 0 : i32
    return %arg0, %c0_i32, %c0_i32_0, %c0_i32_1 : i32, i32, i32, i32
  }
}

</mosaic_0001>

<llo_original>
// kernel: tpu_custom_call.1
$region0: #{tpu_custom_call.1}
  #allocation0 [shape = 'u32[]', space=smem, size = 0x4, offset = 0x4, fixed_abs, tag = 'smem constant byte address 0x4 - core index']
  #allocation1 [shape = 'u32[72,128]{1,0:T(1,128)}', space=vmem, size = 0x9000, scoped, tag = 'internal scratch']
  #allocation2 [shape = 'f32[16,16]{1,0:T(8,128)}', space=vmem, size = 0x2000, scoped, tag = 'scratch operand']
  #allocation3 [shape = 'f32[16,16]{1,0:T(8,128)}', space=vmem, size = 0x2000, scoped, tag = 'scratch operand']
  #allocation4 [shape = 'f32[2,22,128]{2,1,0:T(8,128)}', space=vmem, size = 0x6000, scoped, tag = 'scratch operand']
  %s0 = inlined_call_operand.hbm [shape: f32[2,4,16,16], index: 0, kind: input, shape index: {}]
  %s1 = inlined_call_operand.hbm [shape: f32[98], index: 1, kind: input, shape index: {}]
  %s2 = inlined_call_operand.hbm [shape: f32[2,1,16,16], index: 2, kind: output, shape index: {}]
  %s3 = sld [smem:[#allocation0]]
  $region61: #{tpu_custom_call.1} parent=0
    _
  %s5 = ssub.s32 1, %s3
  %s6 = scalar_select 0, %s5, %s3
  $region1: #{tpu_custom_call.1} parent=0
    #allocation5 [shape = 'u8[65536]{0}', space=vmem, size = 0x10000, scoped, tag = 'input window, operand 0']
    #allocation6 [shape = 's32[2]{0}', space=sflag, size = 0x8, scoped, tag = 'scoped memory for tpu_custom_call.1']
    #allocation7 [shape = 's32[2]{0}', space=sflag, size = 0x8, scoped, tag = 'scoped memory for tpu_custom_call.1']
    #allocation8 [shape = 's32[2]{0}', space=sflag, size = 0x8, scoped, tag = 'scoped memory for tpu_custom_call.1']
    #allocation9 [shape = 'u8[512]{0}', space=smem, size = 0x200, scoped, tag = 'input window, operand 1, single buffered']
    #allocation10 [shape = 'u8[16384]{0}', space=vmem, size = 0x4000, scoped, tag = 'output window, operand 0']
    %7 = vsyncpa [#allocation6], 0
    %s8 = scalar_lea.sflag [#allocation6], 1
    %9 = vsyncpa %s8, 0
    %10 = vsyncpa [#allocation8], 0
    %11 = vsyncpa [#allocation7], 0
    %s12 = scalar_lea.sflag [#allocation7], 1
    %13 = vsyncpa %s12, 0
    loop: start=0, step=1, limit=4
    $region2: #{tpu_custom_call.1} parent=1 // loop_pre_header
      _
    $region3: #{tpu_custom_call.1} parent=1 // loop_header
      %s15 = sphi 0, %s19
      %p16 = scmp.ge.s32.totalorder %s15, 4
      %s22 = sphi 0, %s34
      %s23 = sphi 0, %s30
      %s24 = sphi 0, %s22
      %s25 = sphi 0, %s23
      %s26 = sphi 0, %s24
      %s27 = sphi 0, %s25
      %s39 = sphi 0, %s41
      %s42 = sphi 0, %s39
      %s43 = sphi 0, %s42
      %s59 = sphi 0, %s43
      %s63 = sphi 0, %s63
      %s65 = sphi 0, %s63
      %s66 = sphi 0, %s65
      %s80 = sphi 0, %s66
      %s86 = sphi 0, %s88
      %s89 = sphi 0, %s86
      %s90 = sphi 0, %s89
      %s106 = sphi 0, %s90
    $region4: #{tpu_custom_call.1} parent=1 // loop_header_branch
      %18 = sbr.rel (%p16) target = $region8
    $region5: #{tpu_custom_call.1} parent=1 // loop_body
      %s20 = ssub.s32 %s15, 1
      %s21 = ssub.s32 %s15, 2
      %s28 = sadd.s32 1, %s23
      %p29 = scmp.ge.s32.totalorder %s28, 1
      %s30 = scalar_select %p29, 0, %s28
      %s31 = sadd.s32 1, %s22
      %s32 = scalar_select %p29, %s31, %s22
      %p33 = scmp.ge.s32.totalorder %s32, 2
      %s34 = scalar_select %p33, 0, %s32
      %s35 = ssub.s32 %s22, %s34
      %s36 = ssub.s32 %s23, %s30
      %s37 = sor.u32 %s35, %s36
      %p38 = scmp.eq.s32.totalorder %s37, 0
      %s40 = sadd.s32 %s39, 1
      %s41 = scalar_select %p38, %s39, %s40
      %p44 = pneg %p38
      %p45 = scmp.eq.s32.totalorder %s15, 1
      %p46 = por %p44, %p45
      %p47 = scmp.ne.s32.totalorder %s39, %s42
      %p48 = scmp.eq.s32.totalorder %s15, 0
      %p49 = por %p47, %p48
      %p50 = scmp.ne.s32.totalorder %s39, %s42
      %p51 = scmp.eq.s32.totalorder %s20, 1
      %p52 = por %p50, %p51
      %p53 = scmp.ne.s32.totalorder %s42, %s43
      %p54 = scmp.eq.s32.totalorder %s20, 0
      %p55 = por %p53, %p54
      %p56 = scmp.ne.s32.totalorder %s42, %s43
      %p57 = scmp.eq.s32.totalorder %s21, 1
      %p58 = por %p56, %p57
      %p60 = scmp.ne.s32.totalorder %s43, %s59
      %p61 = scmp.eq.s32.totalorder %s21, 0
      %p62 = por %p60, %p61
      %s64 = sadd.s32 %s63, 1
      %p67 = scmp.eq.s32.totalorder %s15, 1
      %p68 = scmp.ne.s32.totalorder %s63, %s65
      %p69 = scmp.eq.s32.totalorder %s15, 0
      %p70 = por %p68, %p69
      %p71 = scmp.ne.s32.totalorder %s63, %s65
      %p72 = scmp.eq.s32.totalorder %s20, 1
      %p73 = por %p71, %p72
      %p74 = scmp.ne.s32.totalorder %s65, %s66
      %p75 = scmp.eq.s32.totalorder %s20, 0
      %p76 = por %p74, %p75
      %p77 = scmp.ne.s32.totalorder %s65, %s66
      %p78 = scmp.eq.s32.totalorder %s21, 1
      %p79 = por %p77, %p78
      %p81 = scmp.ne.s32.totalorder %s66, %s80
      %p82 = scmp.eq.s32.totalorder %s21, 0
      %p83 = por %p81, %p82
      %s84 = ssub.s32 %s22, %s34
      %p85 = scmp.eq.s32.totalorder %s84, 0
      %s87 = sadd.s32 %s86, 1
      %s88 = scalar_select %p85, %s86, %s87
      %p91 = pneg %p85
      %p92 = scmp.eq.s32.totalorder %s15, 1
      %p93 = por %p91, %p92
      %p94 = scmp.ne.s32.totalorder %s86, %s89
      %p95 = scmp.eq.s32.totalorder %s15, 0
      %p96 = por %p94, %p95
      %p97 = scmp.ne.s32.totalorder %s86, %s89
      %p98 = scmp.eq.s32.totalorder %s20, 1
      %p99 = por %p97, %p98
      %p100 = scmp.ne.s32.totalorder %s89, %s90
      %p101 = scmp.eq.s32.totalorder %s20, 0
      %p102 = por %p100, %p101
      %p103 = scmp.ne.s32.totalorder %s89, %s90
      %p104 = scmp.eq.s32.totalorder %s21, 1
      %p105 = por %p103, %p104
      %p107 = scmp.ne.s32.totalorder %s90, %s106
      %p108 = scmp.eq.s32.totalorder %s21, 0
      %p109 = por %p107, %p108
      %p110 = scmp.le.s32.totalorder 1, %s15
      %p111 = scmp.lt.s32.totalorder %s15, 3
      %p112 = pnand %p110, %p111
      %p113 = pneg %p112
      // Predicated region
      $region9: #{tpu_custom_call.1} parent=5 // pred_check
        _
      $region10: #{tpu_custom_call.1} parent=5 // pred_check_branch
        %115 = sbr.rel (%p112) target = $region12
      $region11: #{tpu_custom_call.1} parent=5 // pred_region
        %s116 = ssub.s32 %s15, 1
        // Predicated region
        $region13: #{tpu_custom_call.1} parent=11 // pred_check
          %p117 = pneg %p76
        $region14: #{tpu_custom_call.1} parent=11 // pred_check_branch
          %119 = sbr.rel (%p117) target = $region16
        $region15: #{tpu_custom_call.1} parent=11 // pred_region
          %121 = vsyncadd [#allocation8], 0
          %s123 = sshll.u32 %s1, 4
          %s124 = int_to_ptr.hbm [resolvable:$true] %s123
          %126 = dma.hbm_to_smem %s124, 16, [#allocation9], [#allocation8]
        $region16: #{tpu_custom_call.1} parent=11 // pred_fallthru
          _
      $region12: #{tpu_custom_call.1} parent=5 // pred_fallthru
        _
      %p127 = scmp.lt.s32.totalorder %s15, 2
      // Predicated region
      $region17: #{tpu_custom_call.1} parent=5 // pred_check
        %p128 = pneg %p127
      $region18: #{tpu_custom_call.1} parent=5 // pred_check_branch
        %130 = sbr.rel (%p128) target = $region20
      $region19: #{tpu_custom_call.1} parent=5 // pred_region
        // Predicated region
        $region21: #{tpu_custom_call.1} parent=19 // pred_check
          %p131 = pneg %p49
        $region22: #{tpu_custom_call.1} parent=19 // pred_check_branch
          %133 = sbr.rel (%p131) target = $region24
        $region23: #{tpu_custom_call.1} parent=19 // pred_region
          %s134 = sand.u32 %s39, 1
          %s135 = scalar_lea.sflag [#allocation6], %s134
          %s136 = sand.u32 %s39, 1
          %s137 = smul.addr %s136, 64
          %s138 = scalar_lea.vmem [#allocation5], %s137
          %s139 = smul.u32 4, %s23
          %141 = vsyncadd %s135, 0
          %s142 = smul.addr %s139, 2
          %s143 = smul.addr %s22, 8
          %s144 = sadd.s32 %s142, %s143
          %s145 = smul.addr %s144, 8
          %s146 = scalar_lea.hbm %s0, %s145
          %s147 = sshll.u32 %s146, 4
          %s148 = int_to_ptr.hbm [resolvable:$true] %s147
          %s149 = sshll.u32 %s138, 4
          %s150 = int_to_ptr.vmem [resolvable:$true] %s149
          %155 = dma.hbm_to_vmem [thread:$0]  %s148, 1024, %s150, %s135, 128, 128, 8
        $region24: #{tpu_custom_call.1} parent=19 // pred_fallthru
          _
      $region20: #{tpu_custom_call.1} parent=5 // pred_fallthru
        _
      %p156 = scmp.le.s32.totalorder 1, %s15
      %p157 = scmp.lt.s32.totalorder %s15, 3
      %p158 = pnand %p156, %p157
      %p159 = pneg %p158
      // Predicated region
      $region25: #{tpu_custom_call.1} parent=5 // pred_check
        _
      $region26: #{tpu_custom_call.1} parent=5 // pred_check_branch
        %161 = sbr.rel (%p158) target = $region28
      $region27: #{tpu_custom_call.1} parent=5 // pred_region
        %s162 = ssub.s32 %s15, 1
        %s163 = sand.u32 %s42, 1
        %s164 = scalar_lea.sflag [#allocation6], %s163
        %s165 = sand.u32 %s42, 1
        %s166 = smul.addr %s165, 64
        %s167 = scalar_lea.vmem [#allocation5], %s166
        // Predicated region
        $region29: #{tpu_custom_call.1} parent=27 // pred_check
          %p168 = pneg %p55
        $region30: #{tpu_custom_call.1} parent=27 // pred_check_branch
          %170 = sbr.rel (%p168) target = $region32
        $region31: #{tpu_custom_call.1} parent=27 // pred_region
          %172 = dma.done %s164, 1024
        $region32: #{tpu_custom_call.1} parent=27 // pred_fallthru
          _
        // Predicated region
        $region33: #{tpu_custom_call.1} parent=27 // pred_check
          %p173 = pneg %p76
        $region34: #{tpu_custom_call.1} parent=27 // pred_check_branch
          %175 = sbr.rel (%p173) target = $region36
        $region35: #{tpu_custom_call.1} parent=27 // pred_region
          %177 = dma.done [#allocation8], 16
        $region36: #{tpu_custom_call.1} parent=27 // pred_fallthru
          _
        %178 = sfence
        %s179 = sand.u32 %s42, 1
        %s180 = scalar_lea.sflag [#allocation6], %s179
        %s181 = sand.u32 %s42, 1
        %s182 = smul.addr %s181, 64
        %s183 = scalar_lea.vmem [#allocation5], %s182
        %p184 = pneg %p55
        %p185 = pneg %p52
        %p186 = pneg %p76
        %p187 = pneg %p73
        %p188 = pneg %p102
        %p189 = pneg %p99
        %s190 = sand.u32 %s89, 1
        %s191 = scalar_lea.sflag [#allocation7], %s190
        %s192 = sand.u32 %s89, 1
        %s193 = smul.addr %s192, 16
        %s194 = scalar_lea.vmem [#allocation10], %s193
        %s195 = smul.u32 4, %s25
        %v196 = vld [vmem:[%s167] sm:$0xff]
        %v197 = vld [vmem:[%s167 + $0x8] sm:$0xff]
        %s198 = scalar_lea.vmem %s167, 16 [#allocation5]
        %v199 = vld [vmem:[%s198] sm:$0xff]
        %v200 = vld [vmem:[%s198 + $0x8] sm:$0xff]
        %v201 = vadd.f32 %v196, %v199
        %v202 = vadd.f32 %v197, %v200
        %v203 = vmax.f32 %v196, %v199
        %v204 = vmax.f32 %v197, %v200
        %s205 = scalar_lea.vmem %s167, 32 [#allocation5]
        %v206 = vld [vmem:[%s205] sm:$0xff]
        %v207 = vld [vmem:[%s205 + $0x8] sm:$0xff]
        %v208 = vadd.f32 %v201, %v206
        %v209 = vadd.f32 %v202, %v207
        %v210 = vmax.f32 %v203, %v206
        %v211 = vmax.f32 %v204, %v207
        %s212 = scalar_lea.vmem %s167, 48 [#allocation5]
        %v213 = vld [vmem:[%s212] sm:$0xff]
        %v214 = vld [vmem:[%s212 + $0x8] sm:$0xff]
        %v215 = vadd.f32 %v208, %v213
        %v216 = vadd.f32 %v209, %v214
        %v217 = vmax.f32 %v210, %v213
        %v218 = vmax.f32 %v211, %v214
        %p219 = scmp.eq.s32.totalorder %s25, 0
        // Predicated region
        $region37: #{tpu_custom_call.1} parent=27 // pred_check
          %p220 = pneg %p219
        $region38: #{tpu_custom_call.1} parent=27 // pred_check_branch
          %222 = sbr.rel (%p220) target = $region40
        $region39: #{tpu_custom_call.1} parent=27 // pred_region
          %vm223 = vcmask 130048
          %224 = vst.msk [vmem:[#allocation2] sm:$0xff] %vm223, %v215
          %225 = vst.msk [vmem:[#allocation2 + $0x8] sm:$0xff] %vm223, %v216
          %226 = vst.msk [vmem:[#allocation3] sm:$0xff] %vm223, %v217
          %227 = vst.msk [vmem:[#allocation3 + $0x8] sm:$0xff] %vm223, %v218
        $region40: #{tpu_custom_call.1} parent=27 // pred_fallthru
          _
        %p228 = scmp.gt.s32.totalorder %s25, 0
        // Predicated region
        $region41: #{tpu_custom_call.1} parent=27 // pred_check
          %p229 = pneg %p228
        $region42: #{tpu_custom_call.1} parent=27 // pred_check_branch
          %231 = sbr.rel (%p229) target = $region44
        $region43: #{tpu_custom_call.1} parent=27 // pred_region
          %v232 = vld [vmem:[#allocation2] sm:$0xff]
          %v233 = vld [vmem:[#allocation2 + $0x8] sm:$0xff]
          %v234 = vadd.f32 %v232, %v215
          %v235 = vadd.f32 %v233, %v216
          %vm236 = vcmask 130048
          %237 = vst.msk [vmem:[#allocation2] sm:$0xff] %vm236, %v234
          %238 = vst.msk [vmem:[#allocation2 + $0x8] sm:$0xff] %vm236, %v235
          %v239 = vld [vmem:[#allocation3] sm:$0xff]
          %v240 = vld [vmem:[#allocation3 + $0x8] sm:$0xff]
          %v241 = vmax.f32 %v239, %v217
          %v242 = vmax.f32 %v240, %v218
          %243 = vst.msk [vmem:[#allocation3] sm:$0xff] %vm236, %v241
          %244 = vst.msk [vmem:[#allocation3 + $0x8] sm:$0xff] %vm236, %v242
        $region44: #{tpu_custom_call.1} parent=27 // pred_fallthru
          _
        // Predicated region
        $region45: #{tpu_custom_call.1} parent=27 // pred_check
          %p245 = pneg %p219
        $region46: #{tpu_custom_call.1} parent=27 // pred_check_branch
          %247 = sbr.rel (%p245) target = $region48
        $region47: #{tpu_custom_call.1} parent=27 // pred_region
          %v248 = vld [vmem:[#allocation2] sm:$0xff]
          %v249 = vld [vmem:[#allocation2 + $0x8] sm:$0xff]
          %v250 = vmul.f32 %v248, 0.25
          %v251 = vmul.f32 %v249, 0.25
          %v252 = vld [vmem:[#allocation3] sm:$0xff]
          %v253 = vld [vmem:[#allocation3 + $0x8] sm:$0xff]
          %254 = vst [vmem:[#allocation4] sm:$0x7] 0.0
          %255 = vst [vmem:[#allocation4 + $0x13] sm:$0x7] 0.0
          %vm256 = vcmask 1047680
          %257 = vst.msk [vmem:[#allocation4 + $0x3] sm:$0xff] %vm256, 0.0
          %258 = vst.msk [vmem:[#allocation4 + $0xb] sm:$0xff] %vm256, 0.0
          %s259 = scalar_lea.vmem [#allocation4], 24
          %260 = vst [vmem:[%s259] sm:$0x7] 0.0
          %261 = vst [vmem:[%s259 + $0x13] sm:$0x7] 0.0
          %262 = vst.msk [vmem:[%s259 + $0x3] sm:$0xff] %vm256, 0.0
          %263 = vst.msk [vmem:[%s259 + $0xb] sm:$0xff] %vm256, 0.0
          %vm264 = vcmask 130048
          %265 = vst.msk [vmem:[#allocation4 + $0x3] sm:$0xff] %vm264, %v250
          %266 = vst.msk [vmem:[#allocation4 + $0xb] sm:$0xff] %vm264, %v251
          %267 = vst.msk [vmem:[%s259 + $0x3] sm:$0xff] %vm264, %v252
          %268 = vst.msk [vmem:[%s259 + $0xb] sm:$0xff] %vm264, %v253
          %v269 = vld [vmem:[#allocation4] sm:$0xff]
          %v270 = vld [vmem:[#allocation4 + $0x8] sm:$0xff]
          %v271 = vld [vmem:[#allocation4 + $0x1] sm:$0xff]
          %v272 = vld [vmem:[#allocation4 + $0x9] sm:$0xff]
          %v273 = vld [vmem:[#allocation4 + $0x2] sm:$0xff]
          %v274 = vld [vmem:[#allocation4 + $0xa] sm:$0xff]
          %v275 = vld [vmem:[#allocation4 + $0x3] sm:$0xff]
          %v276 = vld [vmem:[#allocation4 + $0xb] sm:$0xff]
          %v277 = vld [vmem:[#allocation4 + $0x4] sm:$0xff]
          %v278 = vld [vmem:[#allocation4 + $0xc] sm:$0xff]
          %v279 = vld [vmem:[#allocation4 + $0x5] sm:$0xff]
          %v280 = vld [vmem:[#allocation4 + $0xd] sm:$0xff]
          %v281 = vld [vmem:[#allocation4 + $0x6] sm:$0xff]
          %v282 = vld [vmem:[#allocation4 + $0xe] sm:$0xff]
          %v283 = vld [vmem:[%s259] sm:$0xff]
          %v284 = vld [vmem:[%s259 + $0x8] sm:$0xff]
          %v285 = vld [vmem:[%s259 + $0x1] sm:$0xff]
          %v286 = vld [vmem:[%s259 + $0x9] sm:$0xff]
          %v287 = vld [vmem:[%s259 + $0x2] sm:$0xff]
          %v288 = vld [vmem:[%s259 + $0xa] sm:$0xff]
          %v289 = vld [vmem:[%s259 + $0x3] sm:$0xff]
          %v290 = vld [vmem:[%s259 + $0xb] sm:$0xff]
          %v291 = vld [vmem:[%s259 + $0x4] sm:$0xff]
          %v292 = vld [vmem:[%s259 + $0xc] sm:$0xff]
          %v293 = vld [vmem:[%s259 + $0x5] sm:$0xff]
          %v294 = vld [vmem:[%s259 + $0xd] sm:$0xff]
          %v295 = vld [vmem:[%s259 + $0x6] sm:$0xff]
          %v296 = vld [vmem:[%s259 + $0xe] sm:$0xff]
          %s297 = sld [smem:[#allocation9]]
          %v298 = vstv %s297
          %v299 = vmul.f32 %v269, %v298
          %v300 = vmul.f32 %v270, %v298
          %s301 = sld [smem:[#allocation9 + $0x7]]
          %v302 = vstv %s301
          %v303 = vmul.f32 %v271, %v302
          %v304 = vmul.f32 %v272, %v302
          %v305 = vadd.f32 %v299, %v303
          %v306 = vadd.f32 %v300, %v304
          %s307 = sld [smem:[#allocation9 + $0xe]]
          %v308 = vstv %s307
          %v309 = vmul.f32 %v273, %v308
          %v310 = vmul.f32 %v274, %v308
          %v311 = vadd.f32 %v305, %v309
          %v312 = vadd.f32 %v306, %v310
          %s313 = sld [smem:[#allocation9 + $0x15]]
          %v314 = vstv %s313
          %v315 = vmul.f32 %v275, %v314
          %v316 = vmul.f32 %v276, %v314
          %v317 = vadd.f32 %v311, %v315
          %v318 = vadd.f32 %v312, %v316
          %s319 = sld [smem:[#allocation9 + $0x1c]]
          %v320 = vstv %s319
          %v321 = vmul.f32 %v277, %v320
          %v322 = vmul.f32 %v278, %v320
          %v323 = vadd.f32 %v317, %v321
          %v324 = vadd.f32 %v318, %v322
          %s325 = sld [smem:[#allocation9 + $0x23]]
          %v326 = vstv %s325
          %v327 = vmul.f32 %v279, %v326
          %v328 = vmul.f32 %v280, %v326
          %v329 = vadd.f32 %v323, %v327
          %v330 = vadd.f32 %v324, %v328
          %s331 = sld [smem:[#allocation9 + $0x2a]]
          %v332 = vstv %s331
          %v333 = vmul.f32 %v281, %v332
          %v334 = vmul.f32 %v282, %v332
          %v335 = vadd.f32 %v329, %v333
          %v336 = vadd.f32 %v330, %v334
          %s337 = sld [smem:[#allocation9 + $0x31]]
          %v338 = vstv %s337
          %v339 = vmul.f32 %v283, %v338
          %v340 = vmul.f32 %v284, %v338
          %v341 = vadd.f32 %v335, %v339
          %v342 = vadd.f32 %v336, %v340
          %s343 = sld [smem:[#allocation9 + $0x38]]
          %v344 = vstv %s343
          %v345 = vmul.f32 %v285, %v344
          %v346 = vmul.f32 %v286, %v344
          %v347 = vadd.f32 %v341, %v345
          %v348 = vadd.f32 %v342, %v346
          %s349 = sld [smem:[#allocation9 + $0x3f]]
          %v350 = vstv %s349
          %v351 = vmul.f32 %v287, %v350
          %v352 = vmul.f32 %v288, %v350
          %v353 = vadd.f32 %v347, %v351
          %v354 = vadd.f32 %v348, %v352
          %s355 = sld [smem:[#allocation9 + $0x46]]
          %v356 = vstv %s355
          %v357 = vmul.f32 %v289, %v356
          %v358 = vmul.f32 %v290, %v356
          %v359 = vadd.f32 %v353, %v357
          %v360 = vadd.f32 %v354, %v358
          %s361 = sld [smem:[#allocation9 + $0x4d]]
          %v362 = vstv %s361
          %v363 = vmul.f32 %v291, %v362
          %v364 = vmul.f32 %v292, %v362
          %v365 = vadd.f32 %v359, %v363
          %v366 = vadd.f32 %v360, %v364
          %s367 = sld [smem:[#allocation9 + $0x54]]
          %v368 = vstv %s367
          %v369 = vmul.f32 %v293, %v368
          %v370 = vmul.f32 %v294, %v368
          %v371 = vadd.f32 %v365, %v369
          %v372 = vadd.f32 %v366, %v370
          %s373 = sld [smem:[#allocation9 + $0x5b]]
          %v374 = vstv %s373
          %v375 = vmul.f32 %v295, %v374
          %v376 = vmul.f32 %v296, %v374
          %v377 = vadd.f32 %v371, %v375
          %v378 = vadd.f32 %v372, %v376
          %379 = vrot.lane.b32.xlu0 %v377, 3
          %v380 = vpop.permute.xlu0 %379
          %381 = vrot.lane.b32.xlu0 %v378, 3
          %v382 = vpop.permute.xlu0 %381
          %s383 = sld [smem:[#allocation9 + $0x1]]
          %v384 = vstv %s383
          %v385 = vmul.f32 %v269, %v384
          %v386 = vmul.f32 %v270, %v384
          %s387 = sld [smem:[#allocation9 + $0x8]]
          %v388 = vstv %s387
          %v389 = vmul.f32 %v271, %v388
          %v390 = vmul.f32 %v272, %v388
          %v391 = vadd.f32 %v385, %v389
          %v392 = vadd.f32 %v386, %v390
          %s393 = sld [smem:[#allocation9 + $0xf]]
          %v394 = vstv %s393
          %v395 = vmul.f32 %v273, %v394
          %v396 = vmul.f32 %v274, %v394
          %v397 = vadd.f32 %v391, %v395
          %v398 = vadd.f32 %v392, %v396
          %s399 = sld [smem:[#allocation9 + $0x16]]
          %v400 = vstv %s399
          %v401 = vmul.f32 %v275, %v400
          %v402 = vmul.f32 %v276, %v400
          %v403 = vadd.f32 %v397, %v401
          %v404 = vadd.f32 %v398, %v402
          %s405 = sld [smem:[#allocation9 + $0x1d]]
          %v406 = vstv %s405
          %v407 = vmul.f32 %v277, %v406
          %v408 = vmul.f32 %v278, %v406
          %v409 = vadd.f32 %v403, %v407
          %v410 = vadd.f32 %v404, %v408
          %s411 = sld [smem:[#allocation9 + $0x24]]
          %v412 = vstv %s411
          %v413 = vmul.f32 %v279, %v412
          %v414 = vmul.f32 %v280, %v412
          %v415 = vadd.f32 %v409, %v413
          %v416 = vadd.f32 %v410, %v414
          %s417 = sld [smem:[#allocation9 + $0x2b]]
          %v418 = vstv %s417
          %v419 = vmul.f32 %v281, %v418
          %v420 = vmul.f32 %v282, %v418
          %v421 = vadd.f32 %v415, %v419
          %v422 = vadd.f32 %v416, %v420
          %s423 = sld [smem:[#allocation9 + $0x32]]
          %v424 = vstv %s423
          %v425 = vmul.f32 %v283, %v424
          %v426 = vmul.f32 %v284, %v424
          %v427 = vadd.f32 %v421, %v425
          %v428 = vadd.f32 %v422, %v426
          %s429 = sld [smem:[#allocation9 + $0x39]]
          %v430 = vstv %s429
          %v431 = vmul.f32 %v285, %v430
          %v432 = vmul.f32 %v286, %v430
          %v433 = vadd.f32 %v427, %v431
          %v434 = vadd.f32 %v428, %v432
          %s435 = sld [smem:[#allocation9 + $0x40]]
          %v436 = vstv %s435
          %v437 = vmul.f32 %v287, %v436
          %v438 = vmul.f32 %v288, %v436
          %v439 = vadd.f32 %v433, %v437
          %v440 = vadd.f32 %v434, %v438
          %s441 = sld [smem:[#allocation9 + $0x47]]
          %v442 = vstv %s441
          %v443 = vmul.f32 %v289, %v442
          %v444 = vmul.f32 %v290, %v442
          %v445 = vadd.f32 %v439, %v443
          %v446 = vadd.f32 %v440, %v444
          %s447 = sld [smem:[#allocation9 + $0x4e]]
          %v448 = vstv %s447
          %v449 = vmul.f32 %v291, %v448
          %v450 = vmul.f32 %v292, %v448
          %v451 = vadd.f32 %v445, %v449
          %v452 = vadd.f32 %v446, %v450
          %s453 = sld [smem:[#allocation9 + $0x55]]
          %v454 = vstv %s453
          %v455 = vmul.f32 %v293, %v454
          %v456 = vmul.f32 %v294, %v454
          %v457 = vadd.f32 %v451, %v455
          %v458 = vadd.f32 %v452, %v456
          %s459 = sld [smem:[#allocation9 + $0x5c]]
          %v460 = vstv %s459
          %v461 = vmul.f32 %v295, %v460
          %v462 = vmul.f32 %v296, %v460
          %v463 = vadd.f32 %v457, %v461
          %v464 = vadd.f32 %v458, %v462
          %465 = vrot.lane.b32.xlu0 %v463, 2
          %v466 = vpop.permute.xlu0 %465
          %467 = vrot.lane.b32.xlu0 %v464, 2
          %v468 = vpop.permute.xlu0 %467
          %v469 = vadd.f32 %v380, %v466
          %v470 = vadd.f32 %v382, %v468
          %s471 = sld [smem:[#allocation9 + $0x2]]
          %v472 = vstv %s471
          %v473 = vmul.f32 %v269, %v472
          %v474 = vmul.f32 %v270, %v472
          %s475 = sld [smem:[#allocation9 + $0x9]]
          %v476 = vstv %s475
          %v477 = vmul.f32 %v271, %v476
          %v478 = vmul.f32 %v272, %v476
          %v479 = vadd.f32 %v473, %v477
          %v480 = vadd.f32 %v474, %v478
          %s481 = sld [smem:[#allocation9 + $0x10]]
          %v482 = vstv %s481
          %v483 = vmul.f32 %v273, %v482
          %v484 = vmul.f32 %v274, %v482
          %v485 = vadd.f32 %v479, %v483
          %v486 = vadd.f32 %v480, %v484
          %s487 = sld [smem:[#allocation9 + $0x17]]
          %v488 = vstv %s487
          %v489 = vmul.f32 %v275, %v488
          %v490 = vmul.f32 %v276, %v488
          %v491 = vadd.f32 %v485, %v489
          %v492 = vadd.f32 %v486, %v490
          %s493 = sld [smem:[#allocation9 + $0x1e]]
          %v494 = vstv %s493
          %v495 = vmul.f32 %v277, %v494
          %v496 = vmul.f32 %v278, %v494
          %v497 = vadd.f32 %v491, %v495
          %v498 = vadd.f32 %v492, %v496
          %s499 = sld [smem:[#allocation9 + $0x25]]
          %v500 = vstv %s499
          %v501 = vmul.f32 %v279, %v500
          %v502 = vmul.f32 %v280, %v500
          %v503 = vadd.f32 %v497, %v501
          %v504 = vadd.f32 %v498, %v502
          %s505 = sld [smem:[#allocation9 + $0x2c]]
          %v506 = vstv %s505
          %v507 = vmul.f32 %v281, %v506
          %v508 = vmul.f32 %v282, %v506
          %v509 = vadd.f32 %v503, %v507
          %v510 = vadd.f32 %v504, %v508
          %s511 = sld [smem:[#allocation9 + $0x33]]
          %v512 = vstv %s511
          %v513 = vmul.f32 %v283, %v512
          %v514 = vmul.f32 %v284, %v512
          %v515 = vadd.f32 %v509, %v513
          %v516 = vadd.f32 %v510, %v514
          %s517 = sld [smem:[#allocation9 + $0x3a]]
          %v518 = vstv %s517
          %v519 = vmul.f32 %v285, %v518
          %v520 = vmul.f32 %v286, %v518
          %v521 = vadd.f32 %v515, %v519
          %v522 = vadd.f32 %v516, %v520
          %s523 = sld [smem:[#allocation9 + $0x41]]
          %v524 = vstv %s523
          %v525 = vmul.f32 %v287, %v524
          %v526 = vmul.f32 %v288, %v524
          %v527 = vadd.f32 %v521, %v525
          %v528 = vadd.f32 %v522, %v526
          %s529 = sld [smem:[#allocation9 + $0x48]]
          %v530 = vstv %s529
          %v531 = vmul.f32 %v289, %v530
          %v532 = vmul.f32 %v290, %v530
          %v533 = vadd.f32 %v527, %v531
          %v534 = vadd.f32 %v528, %v532
          %s535 = sld [smem:[#allocation9 + $0x4f]]
          %v536 = vstv %s535
          %v537 = vmul.f32 %v291, %v536
          %v538 = vmul.f32 %v292, %v536
          %v539 = vadd.f32 %v533, %v537
          %v540 = vadd.f32 %v534, %v538
          %s541 = sld [smem:[#allocation9 + $0x56]]
          %v542 = vstv %s541
          %v543 = vmul.f32 %v293, %v542
          %v544 = vmul.f32 %v294, %v542
          %v545 = vadd.f32 %v539, %v543
          %v546 = vadd.f32 %v540, %v544
          %s547 = sld [smem:[#allocation9 + $0x5d]]
          %v548 = vstv %s547
          %v549 = vmul.f32 %v295, %v548
          %v550 = vmul.f32 %v296, %v548
          %v551 = vadd.f32 %v545, %v549
          %v552 = vadd.f32 %v546, %v550
          %553 = vrot.lane.b32.xlu0 %v551, 1
          %v554 = vpop.permute.xlu0 %553
          %555 = vrot.lane.b32.xlu0 %v552, 1
          %v556 = vpop.permute.xlu0 %555
          %v557 = vadd.f32 %v469, %v554
          %v558 = vadd.f32 %v470, %v556
          %s559 = sld [smem:[#allocation9 + $0x3]]
          %v560 = vstv %s559
          %v561 = vmul.f32 %v269, %v560
          %v562 = vmul.f32 %v270, %v560
          %s563 = sld [smem:[#allocation9 + $0xa]]
          %v564 = vstv %s563
          %v565 = vmul.f32 %v271, %v564
          %v566 = vmul.f32 %v272, %v564
          %v567 = vadd.f32 %v561, %v565
          %v568 = vadd.f32 %v562, %v566
          %s569 = sld [smem:[#allocation9 + $0x11]]
          %v570 = vstv %s569
          %v571 = vmul.f32 %v273, %v570
          %v572 = vmul.f32 %v274, %v570
          %v573 = vadd.f32 %v567, %v571
          %v574 = vadd.f32 %v568, %v572
          %s575 = sld [smem:[#allocation9 + $0x18]]
          %v576 = vstv %s575
          %v577 = vmul.f32 %v275, %v576
          %v578 = vmul.f32 %v276, %v576
          %v579 = vadd.f32 %v573, %v577
          %v580 = vadd.f32 %v574, %v578
          %s581 = sld [smem:[#allocation9 + $0x1f]]
          %v582 = vstv %s581
          %v583 = vmul.f32 %v277, %v582
          %v584 = vmul.f32 %v278, %v582
          %v585 = vadd.f32 %v579, %v583
          %v586 = vadd.f32 %v580, %v584
          %s587 = sld [smem:[#allocation9 + $0x26]]
          %v588 = vstv %s587
          %v589 = vmul.f32 %v279, %v588
          %v590 = vmul.f32 %v280, %v588
          %v591 = vadd.f32 %v585, %v589
          %v592 = vadd.f32 %v586, %v590
          %s593 = sld [smem:[#allocation9 + $0x2d]]
          %v594 = vstv %s593
          %v595 = vmul.f32 %v281, %v594
          %v596 = vmul.f32 %v282, %v594
          %v597 = vadd.f32 %v591, %v595
          %v598 = vadd.f32 %v592, %v596
          %s599 = sld [smem:[#allocation9 + $0x34]]
          %v600 = vstv %s599
          %v601 = vmul.f32 %v283, %v600
          %v602 = vmul.f32 %v284, %v600
          %v603 = vadd.f32 %v597, %v601
          %v604 = vadd.f32 %v598, %v602
          %s605 = sld [smem:[#allocation9 + $0x3b]]
          %v606 = vstv %s605
          %v607 = vmul.f32 %v285, %v606
          %v608 = vmul.f32 %v286, %v606
          %v609 = vadd.f32 %v603, %v607
          %v610 = vadd.f32 %v604, %v608
          %s611 = sld [smem:[#allocation9 + $0x42]]
          %v612 = vstv %s611
          %v613 = vmul.f32 %v287, %v612
          %v614 = vmul.f32 %v288, %v612
          %v615 = vadd.f32 %v609, %v613
          %v616 = vadd.f32 %v610, %v614
          %s617 = sld [smem:[#allocation9 + $0x49]]
          %v618 = vstv %s617
          %v619 = vmul.f32 %v289, %v618
          %v620 = vmul.f32 %v290, %v618
          %v621 = vadd.f32 %v615, %v619
          %v622 = vadd.f32 %v616, %v620
          %s623 = sld [smem:[#allocation9 + $0x50]]
          %v624 = vstv %s623
          %v625 = vmul.f32 %v291, %v624
          %v626 = vmul.f32 %v292, %v624
          %v627 = vadd.f32 %v621, %v625
          %v628 = vadd.f32 %v622, %v626
          %s629 = sld [smem:[#allocation9 + $0x57]]
          %v630 = vstv %s629
          %v631 = vmul.f32 %v293, %v630
          %v632 = vmul.f32 %v294, %v630
          %v633 = vadd.f32 %v627, %v631
          %v634 = vadd.f32 %v628, %v632
          %s635 = sld [smem:[#allocation9 + $0x5e]]
          %v636 = vstv %s635
          %v637 = vmul.f32 %v295, %v636
          %v638 = vmul.f32 %v296, %v636
          %v639 = vadd.f32 %v633, %v637
          %v640 = vadd.f32 %v634, %v638
          %v641 = vadd.f32 %v557, %v639
          %v642 = vadd.f32 %v558, %v640
          %s643 = sld [smem:[#allocation9 + $0x4]]
          %v644 = vstv %s643
          %v645 = vmul.f32 %v269, %v644
          %v646 = vmul.f32 %v270, %v644
          %s647 = sld [smem:[#allocation9 + $0xb]]
          %v648 = vstv %s647
          %v649 = vmul.f32 %v271, %v648
          %v650 = vmul.f32 %v272, %v648
          %v651 = vadd.f32 %v645, %v649
          %v652 = vadd.f32 %v646, %v650
          %s653 = sld [smem:[#allocation9 + $0x12]]
          %v654 = vstv %s653
          %v655 = vmul.f32 %v273, %v654
          %v656 = vmul.f32 %v274, %v654
          %v657 = vadd.f32 %v651, %v655
          %v658 = vadd.f32 %v652, %v656
          %s659 = sld [smem:[#allocation9 + $0x19]]
          %v660 = vstv %s659
          %v661 = vmul.f32 %v275, %v660
          %v662 = vmul.f32 %v276, %v660
          %v663 = vadd.f32 %v657, %v661
          %v664 = vadd.f32 %v658, %v662
          %s665 = sld [smem:[#allocation9 + $0x20]]
          %v666 = vstv %s665
          %v667 = vmul.f32 %v277, %v666
          %v668 = vmul.f32 %v278, %v666
          %v669 = vadd.f32 %v663, %v667
          %v670 = vadd.f32 %v664, %v668
          %s671 = sld [smem:[#allocation9 + $0x27]]
          %v672 = vstv %s671
          %v673 = vmul.f32 %v279, %v672
          %v674 = vmul.f32 %v280, %v672
          %v675 = vadd.f32 %v669, %v673
          %v676 = vadd.f32 %v670, %v674
          %s677 = sld [smem:[#allocation9 + $0x2e]]
          %v678 = vstv %s677
          %v679 = vmul.f32 %v281, %v678
          %v680 = vmul.f32 %v282, %v678
          %v681 = vadd.f32 %v675, %v679
          %v682 = vadd.f32 %v676, %v680
          %s683 = sld [smem:[#allocation9 + $0x35]]
          %v684 = vstv %s683
          %v685 = vmul.f32 %v283, %v684
          %v686 = vmul.f32 %v284, %v684
          %v687 = vadd.f32 %v681, %v685
          %v688 = vadd.f32 %v682, %v686
          %s689 = sld [smem:[#allocation9 + $0x3c]]
          %v690 = vstv %s689
          %v691 = vmul.f32 %v285, %v690
          %v692 = vmul.f32 %v286, %v690
          %v693 = vadd.f32 %v687, %v691
          %v694 = vadd.f32 %v688, %v692
          %s695 = sld [smem:[#allocation9 + $0x43]]
          %v696 = vstv %s695
          %v697 = vmul.f32 %v287, %v696
          %v698 = vmul.f32 %v288, %v696
          %v699 = vadd.f32 %v693, %v697
          %v700 = vadd.f32 %v694, %v698
          %s701 = sld [smem:[#allocation9 + $0x4a]]
          %v702 = vstv %s701
          %v703 = vmul.f32 %v289, %v702
          %v704 = vmul.f32 %v290, %v702
          %v705 = vadd.f32 %v699, %v703
          %v706 = vadd.f32 %v700, %v704
          %s707 = sld [smem:[#allocation9 + $0x51]]
          %v708 = vstv %s707
          %v709 = vmul.f32 %v291, %v708
          %v710 = vmul.f32 %v292, %v708
          %v711 = vadd.f32 %v705, %v709
          %v712 = vadd.f32 %v706, %v710
          %s713 = sld [smem:[#allocation9 + $0x58]]
          %v714 = vstv %s713
          %v715 = vmul.f32 %v293, %v714
          %v716 = vmul.f32 %v294, %v714
          %v717 = vadd.f32 %v711, %v715
          %v718 = vadd.f32 %v712, %v716
          %s719 = sld [smem:[#allocation9 + $0x5f]]
          %v720 = vstv %s719
          %v721 = vmul.f32 %v295, %v720
          %v722 = vmul.f32 %v296, %v720
          %v723 = vadd.f32 %v717, %v721
          %v724 = vadd.f32 %v718, %v722
          %725 = vrot.lane.b32.xlu0 %v723, 127
          %v726 = vpop.permute.xlu0 %725
          %727 = vrot.lane.b32.xlu0 %v724, 127
          %v728 = vpop.permute.xlu0 %727
          %v729 = vadd.f32 %v641, %v726
          %v730 = vadd.f32 %v642, %v728
          %s731 = sld [smem:[#allocation9 + $0x5]]
          %v732 = vstv %s731
          %v733 = vmul.f32 %v269, %v732
          %v734 = vmul.f32 %v270, %v732
          %s735 = sld [smem:[#allocation9 + $0xc]]
          %v736 = vstv %s735
          %v737 = vmul.f32 %v271, %v736
          %v738 = vmul.f32 %v272, %v736
          %v739 = vadd.f32 %v733, %v737
          %v740 = vadd.f32 %v734, %v738
          %s741 = sld [smem:[#allocation9 + $0x13]]
          %v742 = vstv %s741
          %v743 = vmul.f32 %v273, %v742
          %v744 = vmul.f32 %v274, %v742
          %v745 = vadd.f32 %v739, %v743
          %v746 = vadd.f32 %v740, %v744
          %s747 = sld [smem:[#allocation9 + $0x1a]]
          %v748 = vstv %s747
          %v749 = vmul.f32 %v275, %v748
          %v750 = vmul.f32 %v276, %v748
          %v751 = vadd.f32 %v745, %v749
          %v752 = vadd.f32 %v746, %v750
          %s753 = sld [smem:[#allocation9 + $0x21]]
          %v754 = vstv %s753
          %v755 = vmul.f32 %v277, %v754
          %v756 = vmul.f32 %v278, %v754
          %v757 = vadd.f32 %v751, %v755
          %v758 = vadd.f32 %v752, %v756
          %s759 = sld [smem:[#allocation9 + $0x28]]
          %v760 = vstv %s759
          %v761 = vmul.f32 %v279, %v760
          %v762 = vmul.f32 %v280, %v760
          %v763 = vadd.f32 %v757, %v761
          %v764 = vadd.f32 %v758, %v762
          %s765 = sld [smem:[#allocation9 + $0x2f]]
          %v766 = vstv %s765
          %v767 = vmul.f32 %v281, %v766
          %v768 = vmul.f32 %v282, %v766
          %v769 = vadd.f32 %v763, %v767
          %v770 = vadd.f32 %v764, %v768
          %s771 = sld [smem:[#allocation9 + $0x36]]
          %v772 = vstv %s771
          %v773 = vmul.f32 %v283, %v772
          %v774 = vmul.f32 %v284, %v772
          %v775 = vadd.f32 %v769, %v773
          %v776 = vadd.f32 %v770, %v774
          %s777 = sld [smem:[#allocation9 + $0x3d]]
          %v778 = vstv %s777
          %v779 = vmul.f32 %v285, %v778
          %v780 = vmul.f32 %v286, %v778
          %v781 = vadd.f32 %v775, %v779
          %v782 = vadd.f32 %v776, %v780
          %s783 = sld [smem:[#allocation9 + $0x44]]
          %v784 = vstv %s783
          %v785 = vmul.f32 %v287, %v784
          %v786 = vmul.f32 %v288, %v784
          %v787 = vadd.f32 %v781, %v785
          %v788 = vadd.f32 %v782, %v786
          %s789 = sld [smem:[#allocation9 + $0x4b]]
          %v790 = vstv %s789
          %v791 = vmul.f32 %v289, %v790
          %v792 = vmul.f32 %v290, %v790
          %v793 = vadd.f32 %v787, %v791
          %v794 = vadd.f32 %v788, %v792
          %s795 = sld [smem:[#allocation9 + $0x52]]
          %v796 = vstv %s795
          %v797 = vmul.f32 %v291, %v796
          %v798 = vmul.f32 %v292, %v796
          %v799 = vadd.f32 %v793, %v797
          %v800 = vadd.f32 %v794, %v798
          %s801 = sld [smem:[#allocation9 + $0x59]]
          %v802 = vstv %s801
          %v803 = vmul.f32 %v293, %v802
          %v804 = vmul.f32 %v294, %v802
          %v805 = vadd.f32 %v799, %v803
          %v806 = vadd.f32 %v800, %v804
          %s807 = sld [smem:[#allocation9 + $0x60]]
          %v808 = vstv %s807
          %v809 = vmul.f32 %v295, %v808
          %v810 = vmul.f32 %v296, %v808
          %v811 = vadd.f32 %v805, %v809
          %v812 = vadd.f32 %v806, %v810
          %813 = vrot.lane.b32.xlu0 %v811, 126
          %v814 = vpop.permute.xlu0 %813
          %815 = vrot.lane.b32.xlu0 %v812, 126
          %v816 = vpop.permute.xlu0 %815
          %v817 = vadd.f32 %v729, %v814
          %v818 = vadd.f32 %v730, %v816
          %s819 = sld [smem:[#allocation9 + $0x6]]
          %v820 = vstv %s819
          %v821 = vmul.f32 %v269, %v820
          %v822 = vmul.f32 %v270, %v820
          %s823 = sld [smem:[#allocation9 + $0xd]]
          %v824 = vstv %s823
          %v825 = vmul.f32 %v271, %v824
          %v826 = vmul.f32 %v272, %v824
          %v827 = vadd.f32 %v821, %v825
          %v828 = vadd.f32 %v822, %v826
          %s829 = sld [smem:[#allocation9 + $0x14]]
          %v830 = vstv %s829
          %v831 = vmul.f32 %v273, %v830
          %v832 = vmul.f32 %v274, %v830
          %v833 = vadd.f32 %v827, %v831
          %v834 = vadd.f32 %v828, %v832
          %s835 = sld [smem:[#allocation9 + $0x1b]]
          %v836 = vstv %s835
          %v837 = vmul.f32 %v275, %v836
          %v838 = vmul.f32 %v276, %v836
          %v839 = vadd.f32 %v833, %v837
          %v840 = vadd.f32 %v834, %v838
          %s841 = sld [smem:[#allocation9 + $0x22]]
          %v842 = vstv %s841
          %v843 = vmul.f32 %v277, %v842
          %v844 = vmul.f32 %v278, %v842
          %v845 = vadd.f32 %v839, %v843
          %v846 = vadd.f32 %v840, %v844
          %s847 = sld [smem:[#allocation9 + $0x29]]
          %v848 = vstv %s847
          %v849 = vmul.f32 %v279, %v848
          %v850 = vmul.f32 %v280, %v848
          %v851 = vadd.f32 %v845, %v849
          %v852 = vadd.f32 %v846, %v850
          %s853 = sld [smem:[#allocation9 + $0x30]]
          %v854 = vstv %s853
          %v855 = vmul.f32 %v281, %v854
          %v856 = vmul.f32 %v282, %v854
          %v857 = vadd.f32 %v851, %v855
          %v858 = vadd.f32 %v852, %v856
          %s859 = sld [smem:[#allocation9 + $0x37]]
          %v860 = vstv %s859
          %v861 = vmul.f32 %v283, %v860
          %v862 = vmul.f32 %v284, %v860
          %v863 = vadd.f32 %v857, %v861
          %v864 = vadd.f32 %v858, %v862
          %s865 = sld [smem:[#allocation9 + $0x3e]]
          %v866 = vstv %s865
          %v867 = vmul.f32 %v285, %v866
          %v868 = vmul.f32 %v286, %v866
          %v869 = vadd.f32 %v863, %v867
          %v870 = vadd.f32 %v864, %v868
          %s871 = sld [smem:[#allocation9 + $0x45]]
          %v872 = vstv %s871
          %v873 = vmul.f32 %v287, %v872
          %v874 = vmul.f32 %v288, %v872
          %v875 = vadd.f32 %v869, %v873
          %v876 = vadd.f32 %v870, %v874
          %s877 = sld [smem:[#allocation9 + $0x4c]]
          %v878 = vstv %s877
          %v879 = vmul.f32 %v289, %v878
          %v880 = vmul.f32 %v290, %v878
          %v881 = vadd.f32 %v875, %v879
          %v882 = vadd.f32 %v876, %v880
          %s883 = sld [smem:[#allocation9 + $0x53]]
          %v884 = vstv %s883
          %v885 = vmul.f32 %v291, %v884
          %v886 = vmul.f32 %v292, %v884
          %v887 = vadd.f32 %v881, %v885
          %v888 = vadd.f32 %v882, %v886
          %s889 = sld [smem:[#allocation9 + $0x5a]]
          %v890 = vstv %s889
          %v891 = vmul.f32 %v293, %v890
          %v892 = vmul.f32 %v294, %v890
          %v893 = vadd.f32 %v887, %v891
          %v894 = vadd.f32 %v888, %v892
          %s895 = sld [smem:[#allocation9 + $0x61]]
          %v896 = vstv %s895
          %v897 = vmul.f32 %v295, %v896
          %v898 = vmul.f32 %v296, %v896
          %v899 = vadd.f32 %v893, %v897
          %v900 = vadd.f32 %v894, %v898
          %901 = vrot.lane.b32.xlu0 %v899, 125
          %v902 = vpop.permute.xlu0 %901
          %903 = vrot.lane.b32.xlu0 %v900, 125
          %v904 = vpop.permute.xlu0 %903
          %v905 = vadd.f32 %v817, %v902
          %v906 = vadd.f32 %v818, %v904
          %v907 = vxor.u32 %v905, 2147483648
          %v908 = vxor.u32 %v906, 2147483648
          %v909 = vmul.f32 %v907, 1.442695
          %v910 = vpow.pop %v909
          %v911 = vmul.f32 %v908, 1.442695
          %v912 = vpow.pop %v911
          %v913 = vadd.f32 %v910, 1.0
          %v914 = vadd.f32 %v912, 1.0
          %v915 = vrcp.pop %v913
          %v916 = vmul.f32 %v913, %v915
          %v917 = vsub.f32 1.0, %v916
          %v918 = vmul.f32 %v915, %v917
          %v919 = vadd.f32 %v915, %v918
          %vm920 = vweird.f32 %v913
          %vm921 = vweird.f32 %v915
          %vm922 = vmor %vm920, %vm921
          %v923 = vsel %vm922, %v915, %v919
          %v924 = vand.u32 2147483647, %v913
          %vm925 = vcmp.eq.f32.partialorder %v924, 8.507059e+37
          %v926 = vand.u32 %v913, 2147483648
          %v927 = vor.u32 1.1754944e-38, %v926
          %v928 = vsel %vm925, %v927, %v923
          %v929 = vmul.f32 1.0, %v928
          %v930 = vrcp.pop %v914
          %v931 = vmul.f32 %v914, %v930
          %v932 = vsub.f32 1.0, %v931
          %v933 = vmul.f32 %v930, %v932
          %v934 = vadd.f32 %v930, %v933
          %vm935 = vweird.f32 %v914
          %vm936 = vweird.f32 %v930
          %vm937 = vmor %vm935, %vm936
          %v938 = vsel %vm937, %v930, %v934
          %v939 = vand.u32 2147483647, %v914
          %vm940 = vcmp.eq.f32.partialorder %v939, 8.507059e+37
          %v941 = vand.u32 %v914, 2147483648
          %v942 = vor.u32 1.1754944e-38, %v941
          %v943 = vsel %vm940, %v942, %v938
          %v944 = vmul.f32 1.0, %v943
          %945 = vst.msk [vmem:[%s194] sm:$0xff] %vm264, %v929
          %946 = vst.msk [vmem:[%s194 + $0x8] sm:$0xff] %vm264, %v944
        $region48: #{tpu_custom_call.1} parent=27 // pred_fallthru
          _
        %s947 = sand.u32 %s89, 1
        %s948 = scalar_lea.sflag [#allocation7], %s947
        %s949 = sand.u32 %s89, 1
        %s950 = smul.addr %s949, 16
        %s951 = scalar_lea.vmem [#allocation10], %s950
        // Predicated region
        $region49: #{tpu_custom_call.1} parent=27 // pred_check
          %p952 = pneg %p99
        $region50: #{tpu_custom_call.1} parent=27 // pred_check_branch
          %954 = sbr.rel (%p952) target = $region52
        $region51: #{tpu_custom_call.1} parent=27 // pred_region
          %956 = vsyncadd %s948, 0
          %s957 = smul.addr %s24, 2
          %s958 = smul.addr %s957, 8
          %s959 = scalar_lea.hbm %s2, %s958
          %s960 = sshll.u32 %s951, 4
          %s961 = int_to_ptr.vmem [resolvable:$true] %s960
          %s962 = sshll.u32 %s959, 4
          %s963 = int_to_ptr.hbm [resolvable:$true] %s962
          %968 = dma.vmem_to_hbm [thread:$0]  %s961, 256, %s963, %s948, 128, 128, 8
        $region52: #{tpu_custom_call.1} parent=27 // pred_fallthru
          _
      $region28: #{tpu_custom_call.1} parent=5 // pred_fallthru
        _
      %p969 = scmp.le.s32.totalorder 2, %s15
      // Predicated region
      $region53: #{tpu_custom_call.1} parent=5 // pred_check
        %p970 = pneg %p969
      $region54: #{tpu_custom_call.1} parent=5 // pred_check_branch
        %972 = sbr.rel (%p970) target = $region56
      $region55: #{tpu_custom_call.1} parent=5 // pred_region
        %s973 = ssub.s32 %s15, 2
        // Predicated region
        $region57: #{tpu_custom_call.1} parent=55 // pred_check
          %p974 = pneg %p105
        $region58: #{tpu_custom_call.1} parent=55 // pred_check_branch
          %976 = sbr.rel (%p974) target = $region60
        $region59: #{tpu_custom_call.1} parent=55 // pred_region
          %s977 = sand.u32 %s90, 1
          %s978 = scalar_lea.sflag [#allocation7], %s977
          %s979 = sand.u32 %s90, 1
          %s980 = smul.addr %s979, 16
          %s981 = scalar_lea.vmem [#allocation10], %s980
          %983 = dma.done %s978, 256
        $region60: #{tpu_custom_call.1} parent=55 // pred_fallthru
          _
      $region56: #{tpu_custom_call.1} parent=5 // pred_fallthru
        _
    $region6: #{tpu_custom_call.1} parent=1 // loop_footer
      %s19 = sadd.s32 1, %s15
    $region7: #{tpu_custom_call.1} parent=1 // loop_footer_branch
      %14 = sbr.rel target = $region3
    $region8: #{tpu_custom_call.1} parent=1 // loop_exit
      _
    %984 = vsyncpa [#allocation6], 1
    %s985 = scalar_lea.sflag [#allocation6], 1
    %986 = vsyncpa %s985, 1
    %987 = vsyncpa [#allocation7], 1
    %s988 = scalar_lea.sflag [#allocation7], 1
    %989 = vsyncpa %s988, 1
    %990 = vsyncpa [#allocation8], 1
    %s991 = scalar_lea.sflag [#allocation8], 1
    %992 = vsyncpa %s991, 1

</llo_original>
